<compile_context>
chip_gen: v5e
topology: v5e:2x2
jax: 0.10.0
libtpu: 0.0.40
codegen_flags: <defaults>
</compile_context>

<pallas_src>
import jax
import jax.numpy as jnp
from jax.experimental import pallas as pl
from jax.experimental.pallas import tpu as pltpu


def sae_kernel(x_ref, we_ref, be_ref, wd_ref, bd_ref, dec_ref, enc_ref):
    h_idx = pl.program_id(1)
    last_h = pl.num_programs(1) - 1

    # Encoder tile: (bm, D) @ (D, tH) on the MXU (bf16 inputs, f32 accumulate),
    # bias + ReLU in f32, encoded stored in bf16.
    h = jnp.dot(x_ref[...], we_ref[...], preferred_element_type=jnp.float32)
    h = jnp.maximum(h + be_ref[...], 0.0)               # [bm, tH] + [1, tH]
    h_bf = h.astype(jnp.bfloat16)
    enc_ref[...] = h_bf

    # Decoder partial product for this H tile: (bm, tH) @ (tH, D).
    # dec_ref is f32 and its block index is (i, 0) for every h, so it stays
    # VMEM-resident across the H axis -> accumulate into it directly.
    partial = jnp.dot(h_bf, wd_ref[...], preferred_element_type=jnp.float32)

    @pl.when(h_idx == 0)
    def _():
        dec_ref[...] = partial

    @pl.when(h_idx != 0)
    def _():
        dec_ref[...] += partial

    # Add the decoder bias exactly once, on the last H step.
    @pl.when(h_idx == last_h)
    def _():
        dec_ref[...] += bd_ref[...]


def _vmem_capacity_bytes():
    try:
        info = pltpu.get_tpu_info()
        cap = getattr(info, "vmem_capacity_bytes", None)
        if cap:
            return int(cap)
    except Exception:
        pass
    return 64 << 20  # conservative: v7x per-TensorCore VMEM


def _working_set_bytes(bm, th, D):
    """Approximate double-buffered VMEM working set for one grid step."""
    bf, f32 = 2, 4
    return (2 * bm * D * bf            # x tile (bf16)
            + 2 * D * th * bf          # W_enc tile (bf16)
            + 2 * th * D * bf          # W_dec tile (bf16)
            + 2 * th * f32             # b_enc tile
            + 2 * D * f32              # b_dec
            + 2 * bm * th * bf         # encoded out tile (bf16)
            + 2 * bm * D * f32)        # decoded out tile (f32, resident over H)


def _pick_bm(B, cap=1024):
    """Largest multiple-of-16 divisor of B, preferring >= 2 batch tiles (v7x)."""
    cap = min(cap, B // 2) if B >= 32 else B
    cap = max(cap, 1)
    for t in range(min(cap, B), 0, -1):
        if B % t == 0 and t % 16 == 0:
            return t
    return B


def _pick_th(H, bm, D, budget):
    """Full H (weights VMEM-resident) if it fits, else largest 128-multiple tile."""
    if H % 128 != 0 or _working_set_bytes(bm, H, D) <= budget:
        return H
    ths = [t for t in range(128, min(H, 1024) + 1, 128) if H % t == 0]
    for t in sorted(ths, reverse=True):
        if _working_set_bytes(bm, t, D) <= budget:
            return t
    return ths[0] if ths else H


def sae_forward(x, w_enc_t, b_enc, w_dec_t, b_dec, *, bm=None, th=None):
    """x: [B, D]; w_enc_t: [D, H]; b_enc: [1, H]; w_dec_t: [H, D]; b_dec: [1, D].

    Returns (decoded [B, D] f32, encoded [B, H] bf16).
    """
    B, D = x.shape
    H = w_enc_t.shape[1]

    phys_vmem = _vmem_capacity_bytes()
    budget = int(phys_vmem * 0.40)   # leave headroom for compiler scratch

    if bm is None:
        bm = _pick_bm(B)
    if th is None:
        th = _pick_th(H, bm, D, budget)
    assert B % bm == 0, f"bm={bm} must divide B={B}"
    assert H % th == 0, f"th={th} must divide H={H}"

    ws = _working_set_bytes(bm, th, D)
    vmem_limit = int(min(phys_vmem * 0.9, max(32 << 20, 2 * ws)))

    # Cast matmul inputs to bf16 once on the XLA side (halves weight/x HBM
    # traffic, native bf16 MXU path). Biases stay f32.
    x_bf = x.astype(jnp.bfloat16)
    w_enc_bf = w_enc_t.astype(jnp.bfloat16)
    w_dec_bf = w_dec_t.astype(jnp.bfloat16)
    b_enc_f = b_enc.astype(jnp.float32)
    b_dec_f = b_dec.astype(jnp.float32)

    grid = (B // bm, H // th)

    # When th == H the weight block index is constant across the whole grid,
    # so the weights are DMA'd once; otherwise they are re-streamed per batch
    # tile (factor B // bm).
    weight_reads = 1 if th == H else (B // bm)
    cost = pl.CostEstimate(
        flops=4 * B * D * H,                       # encoder + decoder matmuls
        transcendentals=0,
        bytes_accessed=(B * D * 2                  # x (bf16)
                        + weight_reads * (D * H * 2 + H * D * 2)  # weights
                        + (H + D) * 4              # biases
                        + B * H * 2                # encoded out (bf16)
                        + B * D * 4),              # decoded out (f32)
    )

    return pl.pallas_call(
        sae_kernel,
        out_shape=(
            jax.ShapeDtypeStruct((B, D), jnp.float32),    # decoded (f32 accum)
            jax.ShapeDtypeStruct((B, H), jnp.bfloat16),   # encoded (bf16)
        ),
        grid_spec=pltpu.PrefetchScalarGridSpec(
            num_scalar_prefetch=0,
            grid=grid,
            in_specs=[
                pl.BlockSpec((bm, D), lambda i, h: (i, 0)),   # x (resident over H)
                pl.BlockSpec((D, th), lambda i, h: (0, h)),   # W_enc^T tile
                pl.BlockSpec((1, th), lambda i, h: (0, h)),   # b_enc tile
                pl.BlockSpec((th, D), lambda i, h: (h, 0)),   # W_dec^T tile
                pl.BlockSpec((1, D), lambda i, h: (0, 0)),    # b_dec (constant)
            ],
            out_specs=[
                pl.BlockSpec((bm, D), lambda i, h: (i, 0)),   # decoded (accum over H)
                pl.BlockSpec((bm, th), lambda i, h: (i, h)),  # encoded tile
            ],
        ),
        compiler_params=pltpu.CompilerParams(
            dimension_semantics=("parallel", "arbitrary"),
            vmem_limit_bytes=vmem_limit,
        ),
        cost_estimate=cost,
    )(x_bf, w_enc_bf, b_enc_f, w_dec_bf, b_dec_f)


def init_sae_params(key, input_size, hidden_size, dtype=jnp.float32):
    """Deterministic init mirroring the PyTorch module's parameter shapes."""
    k0, k1, k2, k3, k4 = jax.random.split(key, 5)

    # TODO(synk): in_bias is defined by the module but unused in forward();
    # kept for parameter parity, never applied.
    in_bias = jax.random.normal(k0, (input_size,), dtype) * 0.01

    # torch.nn.Linear default init: U(-1/sqrt(fan_in), 1/sqrt(fan_in))
    enc_bound = 1.0 / (input_size ** 0.5)
    w_enc = jax.random.uniform(k1, (hidden_size, input_size), dtype,
                               -enc_bound, enc_bound)      # torch layout [out, in]
    b_enc = jax.random.uniform(k2, (hidden_size,), dtype, -enc_bound, enc_bound)

    dec_bound = 1.0 / (hidden_size ** 0.5)
    w_dec = jax.random.uniform(k3, (input_size, hidden_size), dtype,
                               -dec_bound, dec_bound)      # torch layout [out, in]
    b_dec = jax.random.uniform(k4, (input_size,), dtype, -dec_bound, dec_bound)

    return in_bias, w_enc, b_enc, w_dec, b_dec


if __name__ == "__main__":
    input_size = 256
    hidden_size = 512
    batch = 256

    key = jax.random.PRNGKey(0)
    kx, kp = jax.random.split(key)

    x = jax.random.normal(kx, (batch, input_size), jnp.float32)
    in_bias, w_enc, b_enc, w_dec, b_dec = init_sae_params(kp, input_size, hidden_size)

    # Pre-transpose weights to [in, out] for row-major x @ W, biases to [1, dim].
    w_enc_t = w_enc.T                    # [input_size, hidden_size]
    w_dec_t = w_dec.T                    # [hidden_size, input_size]
    b_enc_2d = b_enc.reshape(1, -1)
    b_dec_2d = b_dec.reshape(1, -1)

    # Reference with the kernel's numerics (bf16 MXU inputs, f32 accumulation).
    xb = x.astype(jnp.bfloat16)
    web = w_enc_t.astype(jnp.bfloat16)
    wdb = w_dec_t.astype(jnp.bfloat16)
    enc_ref = jnp.maximum(
        jnp.dot(xb, web, preferred_element_type=jnp.float32) + b_enc_2d, 0.0)
    dec_ref = jnp.dot(enc_ref.astype(jnp.bfloat16), wdb,
                      preferred_element_type=jnp.float32) + b_dec_2d

    def check(decoded, encoded):
        assert decoded.shape == (batch, input_size) and decoded.dtype == jnp.float32
        assert encoded.shape == (batch, hidden_size) and encoded.dtype == jnp.bfloat16
        assert jnp.allclose(encoded.astype(jnp.float32), enc_ref, atol=2e-2, rtol=2e-2)
        assert jnp.allclose(decoded, dec_ref, atol=2e-2, rtol=2e-2)
        # Loose sanity vs full-f32 reference (bf16 rounding only).
        enc_f32 = jnp.maximum(x @ w_enc.T + b_enc, 0.0)
        dec_f32 = enc_f32 @ w_dec.T + b_dec
        rel = jnp.linalg.norm(decoded - dec_f32) / jnp.linalg.norm(dec_f32)
        assert rel < 3e-2, f"relative error vs f32 reference too large: {rel}"

    # 1) Auto tiling: weights fit VMEM here, so th == H (weights DMA'd once and
    #    resident) and the batch axis gets >= 2 tiles for the parallel axis.
    decoded, encoded = sae_forward(x, w_enc_t, b_enc_2d, w_dec_t, b_dec_2d)
    jax.block_until_ready((decoded, encoded))
    check(decoded, encoded)

    # 2) Forced H-streaming tiling: exercises the multi-step accumulate path
    #    (init at h==0, += for h>0, +bias on last h) used at real SAE sizes.
    decoded_s, encoded_s = sae_forward(x, w_enc_t, b_enc_2d, w_dec_t, b_dec_2d,
                                       bm=128, th=256)
    jax.block_until_ready((decoded_s, encoded_s))
    check(decoded_s, encoded_s)
    assert jnp.allclose(decoded, decoded_s, atol=1e-5, rtol=1e-5)
    assert jnp.array_equal(encoded, encoded_s)

    print("KERNEL_OK")
</pallas_src>

<mosaic_0001>
module attributes {stable_mosaic.version = 11 : i64} {
  func.func @sae_kernel(%arg0: i32, %arg1: i32, %arg2: memref<128x256xbf16, #tpu.memory_space<vmem>>, %arg3: memref<256x512xbf16, #tpu.memory_space<vmem>>, %arg4: memref<1x512xf32, #tpu.memory_space<vmem>>, %arg5: memref<512x256xbf16, #tpu.memory_space<vmem>>, %arg6: memref<1x256xf32, #tpu.memory_space<vmem>>, %arg7: memref<128x256xf32, #tpu.memory_space<vmem>>, %arg8: memref<128x512xbf16, #tpu.memory_space<vmem>>) attributes {dimension_semantics = [#tpu.dimension_semantics<parallel>, #tpu.dimension_semantics<arbitrary>], iteration_bounds = array<i64: 2, 1>, scalar_prefetch = 0 : i64, scratch_operands = 0 : i64, tpu.core_type = #tpu.core_type<tc>, window_params = [{transform_indices = @transform_0, window_bounds = array<i64: 128, 256>}, {transform_indices = @transform_1, window_bounds = array<i64: 256, 512>}, {transform_indices = @transform_2, window_bounds = array<i64: 1, 512>}, {transform_indices = @transform_3, window_bounds = array<i64: 512, 256>}, {pipeline_mode = #tpu.pipeline_mode<synchronous>, transform_indices = @transform_4, window_bounds = array<i64: 1, 256>}, {transform_indices = @transform_5, window_bounds = array<i64: 128, 256>}, {transform_indices = @transform_6, window_bounds = array<i64: 128, 512>}]} {
    %c0 = arith.constant 0 : index
    %c0_0 = arith.constant 0 : index
    %0 = vector.load %arg2[%c0, %c0_0] : memref<128x256xbf16, #tpu.memory_space<vmem>>, vector<128x256xbf16>
    %c0_1 = arith.constant 0 : index
    %c0_2 = arith.constant 0 : index
    %1 = vector.load %arg3[%c0_1, %c0_2] : memref<256x512xbf16, #tpu.memory_space<vmem>>, vector<256x512xbf16>
    %cst = arith.constant dense<0.000000e+00> : vector<128x512xf32>
    %2 = tpu.matmul %0, %1, %cst {dimension_numbers = #tpu.dot_dimension_numbers<[1], [0], [0], [1], [0, 0, 1, 1], [], []>} : vector<128x256xbf16>, vector<256x512xbf16>, vector<128x512xf32> -> vector<128x512xf32>
    %c0_3 = arith.constant 0 : index
    %c0_4 = arith.constant 0 : index
    %3 = vector.load %arg4[%c0_3, %c0_4] : memref<1x512xf32, #tpu.memory_space<vmem>>, vector<1x512xf32>
    %4 = vector.broadcast %3 : vector<1x512xf32> to vector<128x512xf32>
    %5 = arith.addf %2, %4 : vector<128x512xf32>
    %cst_5 = arith.constant 0.000000e+00 : f32
    %6 = vector.broadcast %cst_5 : f32 to vector<128x512xf32>
    %7 = arith.maximumf %5, %6 : vector<128x512xf32>
    %8 = arith.truncf %7 : vector<128x512xf32> to vector<128x512xbf16>
    %c0_6 = arith.constant 0 : index
    %c0_7 = arith.constant 0 : index
    %9 = vector.load %arg8[%c0_6, %c0_7] : memref<128x512xbf16, #tpu.memory_space<vmem>>, vector<128x512xbf16>
    tpu.vector_store %arg8[%c0_6, %c0_7], %8 {strides = array<i32>} : memref<128x512xbf16, #tpu.memory_space<vmem>>, vector<128x512xbf16>,
    %c0_8 = arith.constant 0 : index
    %c0_9 = arith.constant 0 : index
    %10 = vector.load %arg5[%c0_8, %c0_9] : memref<512x256xbf16, #tpu.memory_space<vmem>>, vector<512x256xbf16>
    %cst_10 = arith.constant dense<0.000000e+00> : vector<128x256xf32>
    %11 = tpu.matmul %8, %10, %cst_10 {dimension_numbers = #tpu.dot_dimension_numbers<[1], [0], [0], [1], [0, 0, 1, 1], [], []>} : vector<128x512xbf16>, vector<512x256xbf16>, vector<128x256xf32> -> vector<128x256xf32>
    %c0_i32 = arith.constant 0 : i32
    %12 = arith.cmpi eq, %arg1, %c0_i32 : i32
    %13 = arith.extui %12 : i1 to i32
    %c0_i32_11 = arith.constant 0 : i32
    %14 = arith.cmpi ne, %13, %c0_i32_11 : i32
    scf.if %14 {
      %c0_16 = arith.constant 0 : index
      %c0_17 = arith.constant 0 : index
      %21 = vector.load %arg7[%c0_16, %c0_17] : memref<128x256xf32, #tpu.memory_space<vmem>>, vector<128x256xf32>
      tpu.vector_store %arg7[%c0_16, %c0_17], %11 {strides = array<i32>} : memref<128x256xf32, #tpu.memory_space<vmem>>, vector<128x256xf32>,
    } else {
    }
    %c0_i32_12 = arith.constant 0 : i32
    %15 = arith.cmpi ne, %arg1, %c0_i32_12 : i32
    %16 = arith.extui %15 : i1 to i32
    %c0_i32_13 = arith.constant 0 : i32
    %17 = arith.cmpi ne, %16, %c0_i32_13 : i32
    scf.if %17 {
      %c0_16 = arith.constant 0 : index
      %c0_17 = arith.constant 0 : index
      %21 = vector.load %arg7[%c0_16, %c0_17] : memref<128x256xf32, #tpu.memory_space<vmem>>, vector<128x256xf32>
      %22 = arith.addf %21, %11 : vector<128x256xf32>
      %c0_18 = arith.constant 0 : index
      %c0_19 = arith.constant 0 : index
      %23 = vector.load %arg7[%c0_18, %c0_19] : memref<128x256xf32, #tpu.memory_space<vmem>>, vector<128x256xf32>
      tpu.vector_store %arg7[%c0_18, %c0_19], %22 {strides = array<i32>} : memref<128x256xf32, #tpu.memory_space<vmem>>, vector<128x256xf32>,
    } else {
    }
    %c0_i32_14 = arith.constant 0 : i32
    %18 = arith.cmpi eq, %arg1, %c0_i32_14 : i32
    %19 = arith.extui %18 : i1 to i32
    %c0_i32_15 = arith.constant 0 : i32
    %20 = arith.cmpi ne, %19, %c0_i32_15 : i32
    scf.if %20 {
      %c0_16 = arith.constant 0 : index
      %c0_17 = arith.constant 0 : index
      %21 = vector.load %arg7[%c0_16, %c0_17] : memref<128x256xf32, #tpu.memory_space<vmem>>, vector<128x256xf32>
      %c0_18 = arith.constant 0 : index
      %c0_19 = arith.constant 0 : index
      %22 = vector.load %arg6[%c0_18, %c0_19] : memref<1x256xf32, #tpu.memory_space<vmem>>, vector<1x256xf32>
      %23 = vector.broadcast %22 : vector<1x256xf32> to vector<128x256xf32>
      %24 = arith.addf %21, %23 : vector<128x256xf32>
      %c0_20 = arith.constant 0 : index
      %c0_21 = arith.constant 0 : index
      %25 = vector.load %arg7[%c0_20, %c0_21] : memref<128x256xf32, #tpu.memory_space<vmem>>, vector<128x256xf32>
      tpu.vector_store %arg7[%c0_20, %c0_21], %24 {strides = array<i32>} : memref<128x256xf32, #tpu.memory_space<vmem>>, vector<128x256xf32>,
    } else {
    }
    return
  }
  func.func @transform_0(%arg0: i32, %arg1: i32) -> (i32, i32) {
    %c0_i32 = arith.constant 0 : i32
    %c0_i32_0 = arith.constant 0 : i32
    return %arg0, %c0_i32 : i32, i32
  }
  func.func @transform_1(%arg0: i32, %arg1: i32) -> (i32, i32) {
    %c0_i32 = arith.constant 0 : i32
    %c0_i32_0 = arith.constant 0 : i32
    return %c0_i32, %arg1 : i32, i32
  }
  func.func @transform_2(%arg0: i32, %arg1: i32) -> (i32, i32) {
    %c0_i32 = arith.constant 0 : i32
    %c0_i32_0 = arith.constant 0 : i32
    return %c0_i32, %arg1 : i32, i32
  }
  func.func @transform_3(%arg0: i32, %arg1: i32) -> (i32, i32) {
    %c0_i32 = arith.constant 0 : i32
    %c0_i32_0 = arith.constant 0 : i32
    return %arg1, %c0_i32 : i32, i32
  }
  func.func @transform_4(%arg0: i32, %arg1: i32) -> (i32, i32) {
    %c0_i32 = arith.constant 0 : i32
    %c0_i32_0 = arith.constant 0 : i32
    %c0_i32_1 = arith.constant 0 : i32
    return %c0_i32, %c0_i32_0 : i32, i32
  }
  func.func @transform_5(%arg0: i32, %arg1: i32) -> (i32, i32) {
    %c0_i32 = arith.constant 0 : i32
    %c0_i32_0 = arith.constant 0 : i32
    return %arg0, %c0_i32 : i32, i32
  }
  func.func @transform_6(%arg0: i32, %arg1: i32) -> (i32, i32) {
    %c0_i32 = arith.constant 0 : i32
    return %arg0, %arg1 : i32, i32
  }
}

</mosaic_0001>

<llo_original>
// kernel: tpu_custom_call.1
$region0: #{tpu_custom_call.1}
  #allocation0 [shape = 'u32[]', space=smem, size = 0x4, offset = 0x4, fixed_abs, tag = 'smem constant byte address 0x4 - core index']
  #allocation1 [shape = 'u32[72,128]{1,0:T(1,128)}', space=vmem, size = 0x9000, scoped, tag = 'internal scratch']
  %s0 = inlined_call_operand.hbm [shape: bf16[256,256], index: 0, kind: input, shape index: {}]
  %s1 = inlined_call_operand.hbm [shape: bf16[256,512], index: 1, kind: input, shape index: {}]
  %s2 = inlined_call_operand.hbm [shape: f32[1,512], index: 2, kind: input, shape index: {}]
  %s3 = inlined_call_operand.hbm [shape: bf16[512,256], index: 3, kind: input, shape index: {}]
  %s4 = inlined_call_operand.vmem [shape: f32[1,256], index: 4, kind: input, shape index: {}]
  %s5 = inlined_call_operand.hbm [shape: f32[256,256], index: 5, kind: output, shape index: {0}]
  %s6 = inlined_call_operand.hbm [shape: bf16[256,512], index: 6, kind: output, shape index: {1}]
  %7 = xla_tuple %s5, %s6
  %s8 = sld [smem:[#allocation0]]
  $region89: #{tpu_custom_call.1} parent=0
    _
  %s10 = ssub.s32 1, %s8
  %s11 = scalar_select 0, %s10, %s8
  $region1: #{tpu_custom_call.1} parent=0
    #allocation2 [shape = 'u8[131072]{0}', space=vmem, size = 0x20000, scoped, tag = 'input window, operand 0']
    #allocation3 [shape = 's32[2]{0}', space=sflag, size = 0x8, scoped, tag = 'scoped memory for tpu_custom_call.1']
    #allocation4 [shape = 's32[2]{0}', space=sflag, size = 0x8, scoped, tag = 'scoped memory for tpu_custom_call.1']
    #allocation5 [shape = 'u8[262144]{0}', space=vmem, size = 0x40000, scoped, tag = 'input window, operand 1, single buffered']
    #allocation6 [shape = 's32[1]{0}', space=sflag, size = 0x4, scoped, tag = 'scoped memory for tpu_custom_call.1']
    #allocation7 [shape = 'u8[2048]{0}', space=vmem, size = 0x800, scoped, tag = 'input window, operand 2, single buffered']
    #allocation8 [shape = 'u8[262144]{0}', space=vmem, size = 0x40000, scoped, tag = 'input window, operand 3, single buffered']
    #allocation9 [shape = 's32[1]{0}', space=sflag, size = 0x4, scoped, tag = 'scoped memory for tpu_custom_call.1']
    #allocation10 [shape = 'u8[262144]{0}', space=vmem, size = 0x40000, scoped, tag = 'output window, operand 0']
    #allocation11 [shape = 'u8[262144]{0}', space=vmem, size = 0x40000, scoped, tag = 'output window, operand 1']
    #allocation12 [shape = 's32[2]{0}', space=sflag, size = 0x8, scoped, tag = 'scoped memory for tpu_custom_call.1']
    %12 = vsyncpa [#allocation3], 0
    %s13 = scalar_lea.sflag [#allocation3], 1
    %14 = vsyncpa %s13, 0
    %15 = vsyncpa [#allocation6], 0
    %16 = vsyncpa [#allocation9], 0
    %17 = vsyncpa [#allocation4], 0
    %s18 = scalar_lea.sflag [#allocation4], 1
    %19 = vsyncpa %s18, 0
    %20 = vsyncpa [#allocation12], 0
    %s21 = scalar_lea.sflag [#allocation12], 1
    %22 = vsyncpa %s21, 0
    loop: start=0, step=1, limit=4
    $region2: #{tpu_custom_call.1} parent=1 // loop_pre_header
      _
    $region3: #{tpu_custom_call.1} parent=1 // loop_header
      %s24 = sphi 0, %s28
      %p25 = scmp.ge.s32.totalorder %s24, 4
      %s31 = sphi 0, %s43
      %s32 = sphi 0, %s39
      %s33 = sphi 0, %s31
      %s34 = sphi 0, %s32
      %s35 = sphi 0, %s33
      %s36 = sphi 0, %s34
      %s46 = sphi 0, %s48
      %s49 = sphi 0, %s46
      %s50 = sphi 0, %s49
      %s66 = sphi 0, %s50
      %s72 = sphi 0, %s74
      %s75 = sphi 0, %s72
      %s76 = sphi 0, %s75
      %s92 = sphi 0, %s76
      %s98 = sphi 0, %s100
      %s101 = sphi 0, %s98
      %s102 = sphi 0, %s101
      %s118 = sphi 0, %s102
      %s124 = sphi 0, %s126
      %s127 = sphi 0, %s124
      %s128 = sphi 0, %s127
      %s144 = sphi 0, %s128
      %s148 = sphi 0, %s148
      %s150 = sphi 0, %s148
      %s151 = sphi 0, %s150
      %s165 = sphi 0, %s151
      %s171 = sphi 0, %s173
      %s174 = sphi 0, %s171
      %s175 = sphi 0, %s174
      %s191 = sphi 0, %s175
      %s199 = sphi 0, %s201
      %s202 = sphi 0, %s199
      %s203 = sphi 0, %s202
      %s219 = sphi 0, %s203
    $region4: #{tpu_custom_call.1} parent=1 // loop_header_branch
      %27 = sbr.rel (%p25) target = $region8
    $region5: #{tpu_custom_call.1} parent=1 // loop_body
      %s29 = ssub.s32 %s24, 1
      %s30 = ssub.s32 %s24, 2
      %s37 = sadd.s32 1, %s32
      %p38 = scmp.ge.s32.totalorder %s37, 1
      %s39 = scalar_select %p38, 0, %s37
      %s40 = sadd.s32 1, %s31
      %s41 = scalar_select %p38, %s40, %s31
      %p42 = scmp.ge.s32.totalorder %s41, 2
      %s43 = scalar_select %p42, 0, %s41
      %s44 = ssub.s32 %s31, %s43
      %p45 = scmp.eq.s32.totalorder %s44, 0
      %s47 = sadd.s32 %s46, 1
      %s48 = scalar_select %p45, %s46, %s47
      %p51 = pneg %p45
      %p52 = scmp.eq.s32.totalorder %s24, 1
      %p53 = por %p51, %p52
      %p54 = scmp.ne.s32.totalorder %s46, %s49
      %p55 = scmp.eq.s32.totalorder %s24, 0
      %p56 = por %p54, %p55
      %p57 = scmp.ne.s32.totalorder %s46, %s49
      %p58 = scmp.eq.s32.totalorder %s29, 1
      %p59 = por %p57, %p58
      %p60 = scmp.ne.s32.totalorder %s49, %s50
      %p61 = scmp.eq.s32.totalorder %s29, 0
      %p62 = por %p60, %p61
      %p63 = scmp.ne.s32.totalorder %s49, %s50
      %p64 = scmp.eq.s32.totalorder %s30, 1
      %p65 = por %p63, %p64
      %p67 = scmp.ne.s32.totalorder %s50, %s66
      %p68 = scmp.eq.s32.totalorder %s30, 0
      %p69 = por %p67, %p68
      %s70 = ssub.s32 %s32, %s39
      %p71 = scmp.eq.s32.totalorder %s70, 0
      %s73 = sadd.s32 %s72, 1
      %s74 = scalar_select %p71, %s72, %s73
      %p77 = pneg %p71
      %p78 = scmp.eq.s32.totalorder %s24, 1
      %p79 = por %p77, %p78
      %p80 = scmp.ne.s32.totalorder %s72, %s75
      %p81 = scmp.eq.s32.totalorder %s24, 0
      %p82 = por %p80, %p81
      %p83 = scmp.ne.s32.totalorder %s72, %s75
      %p84 = scmp.eq.s32.totalorder %s29, 1
      %p85 = por %p83, %p84
      %p86 = scmp.ne.s32.totalorder %s75, %s76
      %p87 = scmp.eq.s32.totalorder %s29, 0
      %p88 = por %p86, %p87
      %p89 = scmp.ne.s32.totalorder %s75, %s76
      %p90 = scmp.eq.s32.totalorder %s30, 1
      %p91 = por %p89, %p90
      %p93 = scmp.ne.s32.totalorder %s76, %s92
      %p94 = scmp.eq.s32.totalorder %s30, 0
      %p95 = por %p93, %p94
      %s96 = ssub.s32 %s32, %s39
      %p97 = scmp.eq.s32.totalorder %s96, 0
      %s99 = sadd.s32 %s98, 1
      %s100 = scalar_select %p97, %s98, %s99
      %p103 = pneg %p97
      %p104 = scmp.eq.s32.totalorder %s24, 1
      %p105 = por %p103, %p104
      %p106 = scmp.ne.s32.totalorder %s98, %s101
      %p107 = scmp.eq.s32.totalorder %s24, 0
      %p108 = por %p106, %p107
      %p109 = scmp.ne.s32.totalorder %s98, %s101
      %p110 = scmp.eq.s32.totalorder %s29, 1
      %p111 = por %p109, %p110
      %p112 = scmp.ne.s32.totalorder %s101, %s102
      %p113 = scmp.eq.s32.totalorder %s29, 0
      %p114 = por %p112, %p113
      %p115 = scmp.ne.s32.totalorder %s101, %s102
      %p116 = scmp.eq.s32.totalorder %s30, 1
      %p117 = por %p115, %p116
      %p119 = scmp.ne.s32.totalorder %s102, %s118
      %p120 = scmp.eq.s32.totalorder %s30, 0
      %p121 = por %p119, %p120
      %s122 = ssub.s32 %s32, %s39
      %p123 = scmp.eq.s32.totalorder %s122, 0
      %s125 = sadd.s32 %s124, 1
      %s126 = scalar_select %p123, %s124, %s125
      %p129 = pneg %p123
      %p130 = scmp.eq.s32.totalorder %s24, 1
      %p131 = por %p129, %p130
      %p132 = scmp.ne.s32.totalorder %s124, %s127
      %p133 = scmp.eq.s32.totalorder %s24, 0
      %p134 = por %p132, %p133
      %p135 = scmp.ne.s32.totalorder %s124, %s127
      %p136 = scmp.eq.s32.totalorder %s29, 1
      %p137 = por %p135, %p136
      %p138 = scmp.ne.s32.totalorder %s127, %s128
      %p139 = scmp.eq.s32.totalorder %s29, 0
      %p140 = por %p138, %p139
      %p141 = scmp.ne.s32.totalorder %s127, %s128
      %p142 = scmp.eq.s32.totalorder %s30, 1
      %p143 = por %p141, %p142
      %p145 = scmp.ne.s32.totalorder %s128, %s144
      %p146 = scmp.eq.s32.totalorder %s30, 0
      %p147 = por %p145, %p146
      %s149 = sadd.s32 %s148, 1
      %p152 = scmp.eq.s32.totalorder %s24, 1
      %p153 = scmp.ne.s32.totalorder %s148, %s150
      %p154 = scmp.eq.s32.totalorder %s24, 0
      %p155 = por %p153, %p154
      %p156 = scmp.ne.s32.totalorder %s148, %s150
      %p157 = scmp.eq.s32.totalorder %s29, 1
      %p158 = por %p156, %p157
      %p159 = scmp.ne.s32.totalorder %s150, %s151
      %p160 = scmp.eq.s32.totalorder %s29, 0
      %p161 = por %p159, %p160
      %p162 = scmp.ne.s32.totalorder %s150, %s151
      %p163 = scmp.eq.s32.totalorder %s30, 1
      %p164 = por %p162, %p163
      %p166 = scmp.ne.s32.totalorder %s151, %s165
      %p167 = scmp.eq.s32.totalorder %s30, 0
      %p168 = por %p166, %p167
      %s169 = ssub.s32 %s31, %s43
      %p170 = scmp.eq.s32.totalorder %s169, 0
      %s172 = sadd.s32 %s171, 1
      %s173 = scalar_select %p170, %s171, %s172
      %p176 = pneg %p170
      %p177 = scmp.eq.s32.totalorder %s24, 1
      %p178 = por %p176, %p177
      %p179 = scmp.ne.s32.totalorder %s171, %s174
      %p180 = scmp.eq.s32.totalorder %s24, 0
      %p181 = por %p179, %p180
      %p182 = scmp.ne.s32.totalorder %s171, %s174
      %p183 = scmp.eq.s32.totalorder %s29, 1
      %p184 = por %p182, %p183
      %p185 = scmp.ne.s32.totalorder %s174, %s175
      %p186 = scmp.eq.s32.totalorder %s29, 0
      %p187 = por %p185, %p186
      %p188 = scmp.ne.s32.totalorder %s174, %s175
      %p189 = scmp.eq.s32.totalorder %s30, 1
      %p190 = por %p188, %p189
      %p192 = scmp.ne.s32.totalorder %s175, %s191
      %p193 = scmp.eq.s32.totalorder %s30, 0
      %p194 = por %p192, %p193
      %s195 = ssub.s32 %s31, %s43
      %s196 = ssub.s32 %s32, %s39
      %s197 = sor.u32 %s195, %s196
      %p198 = scmp.eq.s32.totalorder %s197, 0
      %s200 = sadd.s32 %s199, 1
      %s201 = scalar_select %p198, %s199, %s200
      %p204 = pneg %p198
      %p205 = scmp.eq.s32.totalorder %s24, 1
      %p206 = por %p204, %p205
      %p207 = scmp.ne.s32.totalorder %s199, %s202
      %p208 = scmp.eq.s32.totalorder %s24, 0
      %p209 = por %p207, %p208
      %p210 = scmp.ne.s32.totalorder %s199, %s202
      %p211 = scmp.eq.s32.totalorder %s29, 1
      %p212 = por %p210, %p211
      %p213 = scmp.ne.s32.totalorder %s202, %s203
      %p214 = scmp.eq.s32.totalorder %s29, 0
      %p215 = por %p213, %p214
      %p216 = scmp.ne.s32.totalorder %s202, %s203
      %p217 = scmp.eq.s32.totalorder %s30, 1
      %p218 = por %p216, %p217
      %p220 = scmp.ne.s32.totalorder %s203, %s219
      %p221 = scmp.eq.s32.totalorder %s30, 0
      %p222 = por %p220, %p221
      %p223 = scmp.le.s32.totalorder 1, %s24
      %p224 = scmp.lt.s32.totalorder %s24, 3
      %p225 = pnand %p223, %p224
      %p226 = pneg %p225
      // Predicated region
      $region9: #{tpu_custom_call.1} parent=5 // pred_check
        _
      $region10: #{tpu_custom_call.1} parent=5 // pred_check_branch
        %228 = sbr.rel (%p225) target = $region12
      $region11: #{tpu_custom_call.1} parent=5 // pred_region
        %s229 = ssub.s32 %s24, 1
        // Predicated region
        $region13: #{tpu_custom_call.1} parent=11 // pred_check
          %p230 = pneg %p88
        $region14: #{tpu_custom_call.1} parent=11 // pred_check_branch
          %232 = sbr.rel (%p230) target = $region16
        $region15: #{tpu_custom_call.1} parent=11 // pred_region
          %s233 = smul.u32 4, %s34
          %235 = vsyncadd [#allocation6], 0
          %s236 = smul.addr %s233, 4
          %s237 = scalar_lea.hbm %s1, %s236
          %s238 = sshll.u32 %s237, 4
          %s239 = int_to_ptr.hbm [resolvable:$true] %s238
          %s240 = sshll.u32 [#allocation5], 4
          %s241 = int_to_ptr.vmem [resolvable:$true] %s240
          %246 = dma.hbm_to_vmem [thread:$0]  %s239, 8192, %s241, [#allocation6], 256, 256, 16
        $region16: #{tpu_custom_call.1} parent=11 // pred_fallthru
          _
        // Predicated region
        $region17: #{tpu_custom_call.1} parent=11 // pred_check
          %p247 = pneg %p114
        $region18: #{tpu_custom_call.1} parent=11 // pred_check_branch
          %249 = sbr.rel (%p247) target = $region20
        $region19: #{tpu_custom_call.1} parent=11 // pred_region
          %s250 = smul.u32 4, %s34
          %252 = vsyncadd [#allocation6], 0
          %s253 = scalar_lea.hbm %s2, %s250
          %s255 = sshll.u32 %s253, 4
          %s256 = int_to_ptr.hbm [resolvable:$true] %s255
          %s257 = sshll.u32 [#allocation7], 4
          %s258 = int_to_ptr.vmem [resolvable:$true] %s257
          %260 = dma.hbm_to_vmem [thread:$0]  %s256, 64, %s258, [#allocation6]
        $region20: #{tpu_custom_call.1} parent=11 // pred_fallthru
          _
        // Predicated region
        $region21: #{tpu_custom_call.1} parent=11 // pred_check
          %p261 = pneg %p140
        $region22: #{tpu_custom_call.1} parent=11 // pred_check_branch
          %263 = sbr.rel (%p261) target = $region24
        $region23: #{tpu_custom_call.1} parent=11 // pred_region
          %s264 = smul.u32 64, %s34
          %266 = vsyncadd [#allocation9], 0
          %s267 = smul.addr %s264, 2
          %s268 = smul.addr %s267, 4
          %s269 = scalar_lea.hbm %s3, %s268
          %s270 = sshll.u32 %s269, 4
          %s271 = int_to_ptr.hbm [resolvable:$true] %s270
          %s272 = sshll.u32 [#allocation8], 4
          %s273 = int_to_ptr.vmem [resolvable:$true] %s272
          %278 = dma.hbm_to_vmem [thread:$0]  %s271, 8192, %s273, [#allocation9], 128, 128, 8
        $region24: #{tpu_custom_call.1} parent=11 // pred_fallthru
          _
        // Predicated region
        $region25: #{tpu_custom_call.1} parent=11 // pred_check
          %p279 = pneg %p161
        $region26: #{tpu_custom_call.1} parent=11 // pred_check_branch
          %281 = sbr.rel (%p279) target = $region28
        $region27: #{tpu_custom_call.1} parent=11 // pred_region
          _
        $region28: #{tpu_custom_call.1} parent=11 // pred_fallthru
          _
      $region12: #{tpu_custom_call.1} parent=5 // pred_fallthru
        _
      %p282 = scmp.lt.s32.totalorder %s24, 2
      // Predicated region
      $region29: #{tpu_custom_call.1} parent=5 // pred_check
        %p283 = pneg %p282
      $region30: #{tpu_custom_call.1} parent=5 // pred_check_branch
        %285 = sbr.rel (%p283) target = $region32
      $region31: #{tpu_custom_call.1} parent=5 // pred_region
        // Predicated region
        $region33: #{tpu_custom_call.1} parent=31 // pred_check
          %p286 = pneg %p56
        $region34: #{tpu_custom_call.1} parent=31 // pred_check_branch
          %288 = sbr.rel (%p286) target = $region36
        $region35: #{tpu_custom_call.1} parent=31 // pred_region
          %s289 = sand.u32 %s46, 1
          %s290 = scalar_lea.sflag [#allocation3], %s289
          %s291 = sand.u32 %s46, 1
          %s292 = smul.addr %s291, 128
          %s293 = scalar_lea.vmem [#allocation2], %s292
          %s294 = smul.u32 16, %s31
          %296 = vsyncadd %s290, 0
          %s297 = smul.addr %s294, 2
          %s298 = smul.addr %s297, 4
          %s299 = scalar_lea.hbm %s0, %s298
          %s300 = sshll.u32 %s299, 4
          %s301 = int_to_ptr.hbm [resolvable:$true] %s300
          %s302 = sshll.u32 %s293, 4
          %s303 = int_to_ptr.vmem [resolvable:$true] %s302
          %308 = dma.hbm_to_vmem [thread:$0]  %s301, 2048, %s303, %s290, 128, 128, 8
        $region36: #{tpu_custom_call.1} parent=31 // pred_fallthru
          _
      $region32: #{tpu_custom_call.1} parent=5 // pred_fallthru
        _
      %p309 = scmp.le.s32.totalorder 1, %s24
      %p310 = scmp.lt.s32.totalorder %s24, 3
      %p311 = pnand %p309, %p310
      %p312 = pneg %p311
      // Predicated region
      $region37: #{tpu_custom_call.1} parent=5 // pred_check
        _
      $region38: #{tpu_custom_call.1} parent=5 // pred_check_branch
        %314 = sbr.rel (%p311) target = $region40
      $region39: #{tpu_custom_call.1} parent=5 // pred_region
        %s315 = ssub.s32 %s24, 1
        %s316 = sand.u32 %s49, 1
        %s317 = scalar_lea.sflag [#allocation3], %s316
        %s318 = sand.u32 %s49, 1
        %s319 = smul.addr %s318, 128
        %s320 = scalar_lea.vmem [#allocation2], %s319
        // Predicated region
        $region41: #{tpu_custom_call.1} parent=39 // pred_check
          %p321 = pneg %p62
        $region42: #{tpu_custom_call.1} parent=39 // pred_check_branch
          %323 = sbr.rel (%p321) target = $region44
        $region43: #{tpu_custom_call.1} parent=39 // pred_region
          %325 = dma.done %s317, 2048
        $region44: #{tpu_custom_call.1} parent=39 // pred_fallthru
          _
        // Predicated region
        $region45: #{tpu_custom_call.1} parent=39 // pred_check
          %p326 = pneg %p88
        $region46: #{tpu_custom_call.1} parent=39 // pred_check_branch
          %328 = sbr.rel (%p326) target = $region48
        $region47: #{tpu_custom_call.1} parent=39 // pred_region
          %330 = dma.done [#allocation6], 8192
        $region48: #{tpu_custom_call.1} parent=39 // pred_fallthru
          _
        // Predicated region
        $region49: #{tpu_custom_call.1} parent=39 // pred_check
          %p331 = pneg %p114
        $region50: #{tpu_custom_call.1} parent=39 // pred_check_branch
          %333 = sbr.rel (%p331) target = $region52
        $region51: #{tpu_custom_call.1} parent=39 // pred_region
          %335 = dma.done [#allocation6], 64
        $region52: #{tpu_custom_call.1} parent=39 // pred_fallthru
          _
        // Predicated region
        $region53: #{tpu_custom_call.1} parent=39 // pred_check
          %p336 = pneg %p140
        $region54: #{tpu_custom_call.1} parent=39 // pred_check_branch
          %338 = sbr.rel (%p336) target = $region56
        $region55: #{tpu_custom_call.1} parent=39 // pred_region
          %340 = dma.done [#allocation9], 8192
        $region56: #{tpu_custom_call.1} parent=39 // pred_fallthru
          _
        %s341 = sand.u32 %s49, 1
        %s342 = scalar_lea.sflag [#allocation3], %s341
        %s343 = sand.u32 %s49, 1
        %s344 = smul.addr %s343, 128
        %s345 = scalar_lea.vmem [#allocation2], %s344
        %p346 = pneg %p62
        %p347 = pneg %p59
        %p348 = pneg %p88
        %p349 = pneg %p85
        %p350 = pneg %p114
        %p351 = pneg %p111
        %p352 = pneg %p140
        %p353 = pneg %p137
        %p354 = pneg %p161
        %p355 = pneg %p158
        %p356 = pneg %p187
        %p357 = pneg %p184
        %s358 = sand.u32 %s174, 1
        %s359 = scalar_lea.sflag [#allocation4], %s358
        %s360 = sand.u32 %s174, 1
        %s361 = smul.addr %s360, 256
        %s362 = scalar_lea.vmem [#allocation10], %s361
        %p363 = pneg %p215
        %p364 = pneg %p212
        %s365 = sand.u32 %s202, 1
        %s366 = scalar_lea.sflag [#allocation12], %s365
        %s367 = sand.u32 %s202, 1
        %s368 = smul.addr %s367, 256
        %s369 = scalar_lea.vmem [#allocation11], %s368
        %s370 = smul.u32 16, %s33
        %s371 = smul.u32 4, %s34
        %s372 = smul.u32 4, %s34
        %s373 = smul.u32 64, %s34
        %s374 = smul.u32 16, %s33
        %s375 = smul.u32 16, %s33
        %s376 = smul.u32 4, %s34
        %v377 = vld [vmem:[%s320] sm:$0xff]
        %v378 = vld [vmem:[%s320 + $0x8] sm:$0xff]
        %v379 = vld [vmem:[%s320 + $0x10] sm:$0xff]
        %v380 = vld [vmem:[%s320 + $0x18] sm:$0xff]
        %v381 = vld [vmem:[%s320 + $0x20] sm:$0xff]
        %v382 = vld [vmem:[%s320 + $0x28] sm:$0xff]
        %v383 = vld [vmem:[%s320 + $0x30] sm:$0xff]
        %v384 = vld [vmem:[%s320 + $0x38] sm:$0xff]
        %v385 = vld [vmem:[%s320 + $0x40] sm:$0xff]
        %v386 = vld [vmem:[%s320 + $0x48] sm:$0xff]
        %v387 = vld [vmem:[%s320 + $0x50] sm:$0xff]
        %v388 = vld [vmem:[%s320 + $0x58] sm:$0xff]
        %v389 = vld [vmem:[%s320 + $0x60] sm:$0xff]
        %v390 = vld [vmem:[%s320 + $0x68] sm:$0xff]
        %v391 = vld [vmem:[%s320 + $0x70] sm:$0xff]
        %v392 = vld [vmem:[%s320 + $0x78] sm:$0xff]
        %v393 = vld [vmem:[#allocation5] sm:$0xff]
        %v394 = vld [vmem:[#allocation5 + $0x8] sm:$0xff]
        %v395 = vld [vmem:[#allocation5 + $0x10] sm:$0xff]
        %v396 = vld [vmem:[#allocation5 + $0x18] sm:$0xff]
        %v397 = vld [vmem:[#allocation5 + $0x20] sm:$0xff]
        %v398 = vld [vmem:[#allocation5 + $0x28] sm:$0xff]
        %v399 = vld [vmem:[#allocation5 + $0x30] sm:$0xff]
        %v400 = vld [vmem:[#allocation5 + $0x38] sm:$0xff]
        %v401 = vld [vmem:[#allocation5 + $0x40] sm:$0xff]
        %v402 = vld [vmem:[#allocation5 + $0x48] sm:$0xff]
        %v403 = vld [vmem:[#allocation5 + $0x50] sm:$0xff]
        %v404 = vld [vmem:[#allocation5 + $0x58] sm:$0xff]
        %v405 = vld [vmem:[#allocation5 + $0x60] sm:$0xff]
        %v406 = vld [vmem:[#allocation5 + $0x68] sm:$0xff]
        %v407 = vld [vmem:[#allocation5 + $0x70] sm:$0xff]
        %v408 = vld [vmem:[#allocation5 + $0x78] sm:$0xff]
        %v409 = vld [vmem:[#allocation5 + $0x80] sm:$0xff]
        %v410 = vld [vmem:[#allocation5 + $0x88] sm:$0xff]
        %v411 = vld [vmem:[#allocation5 + $0x90] sm:$0xff]
        %v412 = vld [vmem:[#allocation5 + $0x98] sm:$0xff]
        %v413 = vld [vmem:[#allocation5 + $0xa0] sm:$0xff]
        %v414 = vld [vmem:[#allocation5 + $0xa8] sm:$0xff]
        %v415 = vld [vmem:[#allocation5 + $0xb0] sm:$0xff]
        %v416 = vld [vmem:[#allocation5 + $0xb8] sm:$0xff]
        %v417 = vld [vmem:[#allocation5 + $0xc0] sm:$0xff]
        %v418 = vld [vmem:[#allocation5 + $0xc8] sm:$0xff]
        %v419 = vld [vmem:[#allocation5 + $0xd0] sm:$0xff]
        %v420 = vld [vmem:[#allocation5 + $0xd8] sm:$0xff]
        %v421 = vld [vmem:[#allocation5 + $0xe0] sm:$0xff]
        %v422 = vld [vmem:[#allocation5 + $0xe8] sm:$0xff]
        %v423 = vld [vmem:[#allocation5 + $0xf0] sm:$0xff]
        %v424 = vld [vmem:[#allocation5 + $0xf8] sm:$0xff]
        %v425 = vld [vmem:[#allocation5 + $0x100] sm:$0xff]
        %v426 = vld [vmem:[#allocation5 + $0x108] sm:$0xff]
        %v427 = vld [vmem:[#allocation5 + $0x110] sm:$0xff]
        %v428 = vld [vmem:[#allocation5 + $0x118] sm:$0xff]
        %v429 = vld [vmem:[#allocation5 + $0x120] sm:$0xff]
        %v430 = vld [vmem:[#allocation5 + $0x128] sm:$0xff]
        %v431 = vld [vmem:[#allocation5 + $0x130] sm:$0xff]
        %v432 = vld [vmem:[#allocation5 + $0x138] sm:$0xff]
        %v433 = vld [vmem:[#allocation5 + $0x140] sm:$0xff]
        %v434 = vld [vmem:[#allocation5 + $0x148] sm:$0xff]
        %v435 = vld [vmem:[#allocation5 + $0x150] sm:$0xff]
        %v436 = vld [vmem:[#allocation5 + $0x158] sm:$0xff]
        %v437 = vld [vmem:[#allocation5 + $0x160] sm:$0xff]
        %v438 = vld [vmem:[#allocation5 + $0x168] sm:$0xff]
        %v439 = vld [vmem:[#allocation5 + $0x170] sm:$0xff]
        %v440 = vld [vmem:[#allocation5 + $0x178] sm:$0xff]
        %v441 = vld [vmem:[#allocation5 + $0x180] sm:$0xff]
        %v442 = vld [vmem:[#allocation5 + $0x188] sm:$0xff]
        %v443 = vld [vmem:[#allocation5 + $0x190] sm:$0xff]
        %v444 = vld [vmem:[#allocation5 + $0x198] sm:$0xff]
        %v445 = vld [vmem:[#allocation5 + $0x1a0] sm:$0xff]
        %v446 = vld [vmem:[#allocation5 + $0x1a8] sm:$0xff]
        %v447 = vld [vmem:[#allocation5 + $0x1b0] sm:$0xff]
        %v448 = vld [vmem:[#allocation5 + $0x1b8] sm:$0xff]
        %v449 = vld [vmem:[#allocation5 + $0x1c0] sm:$0xff]
        %v450 = vld [vmem:[#allocation5 + $0x1c8] sm:$0xff]
        %v451 = vld [vmem:[#allocation5 + $0x1d0] sm:$0xff]
        %v452 = vld [vmem:[#allocation5 + $0x1d8] sm:$0xff]
        %v453 = vld [vmem:[#allocation5 + $0x1e0] sm:$0xff]
        %v454 = vld [vmem:[#allocation5 + $0x1e8] sm:$0xff]
        %v455 = vld [vmem:[#allocation5 + $0x1f0] sm:$0xff]
        %v456 = vld [vmem:[#allocation5 + $0x1f8] sm:$0xff]
        %v457 = vld [vmem:[#allocation7] sm:$0xf]
        %v459 = vperm.slane %v457, 0
        %v460 = vperm.slane %v457, 1
        %v461 = vperm.slane %v457, 2
        %v462 = vperm.slane %v457, 3
        %v483 = vunpack.c.l.b16 %v377
        %v484 = vunpack.c.h.b16 %v377
        %v485 = vunpack.c.l.b16 %v378
        %v486 = vunpack.c.h.b16 %v378
        %v487 = vunpack.c.l.b16 %v379
        %v488 = vunpack.c.h.b16 %v379
        %v489 = vunpack.c.l.b16 %v380
        %v490 = vunpack.c.h.b16 %v380
        %v491 = vunpack.c.l.b16 %v381
        %v492 = vunpack.c.h.b16 %v381
        %v493 = vunpack.c.l.b16 %v382
        %v494 = vunpack.c.h.b16 %v382
        %v495 = vunpack.c.l.b16 %v383
        %v496 = vunpack.c.h.b16 %v383
        %v497 = vunpack.c.l.b16 %v384
        %v498 = vunpack.c.h.b16 %v384
        %v499 = vunpack.c.l.b16 %v385
        %v500 = vunpack.c.h.b16 %v385
        %v501 = vunpack.c.l.b16 %v386
        %v502 = vunpack.c.h.b16 %v386
        %v503 = vunpack.c.l.b16 %v387
        %v504 = vunpack.c.h.b16 %v387
        %v505 = vunpack.c.l.b16 %v388
        %v506 = vunpack.c.h.b16 %v388
        %v507 = vunpack.c.l.b16 %v389
        %v508 = vunpack.c.h.b16 %v389
        %v509 = vunpack.c.l.b16 %v390
        %v510 = vunpack.c.h.b16 %v390
        %v511 = vunpack.c.l.b16 %v391
        %v512 = vunpack.c.h.b16 %v391
        %v513 = vunpack.c.l.b16 %v392
        %v514 = vunpack.c.h.b16 %v392
        %v515 = vpack.c.b16 %v485, %v483
        %v516 = vpack.c.b16 %v486, %v484
        %v517 = vpack.c.b16 %v489, %v487
        %v518 = vpack.c.b16 %v490, %v488
        %v519 = vpack.c.b16 %v493, %v491
        %v520 = vpack.c.b16 %v494, %v492
        %v521 = vpack.c.b16 %v497, %v495
        %v522 = vpack.c.b16 %v498, %v496
        %v523 = vpack.c.b16 %v501, %v499
        %v524 = vpack.c.b16 %v502, %v500
        %v525 = vpack.c.b16 %v505, %v503
        %v526 = vpack.c.b16 %v506, %v504
        %v527 = vpack.c.b16 %v509, %v507
        %v528 = vpack.c.b16 %v510, %v508
        %v529 = vpack.c.b16 %v513, %v511
        %v530 = vpack.c.b16 %v514, %v512
        %v611 = vunpack.c.l.b16 %v393
        %v612 = vunpack.c.h.b16 %v393
        %v613 = vunpack.c.l.b16 %v394
        %v614 = vunpack.c.h.b16 %v394
        %v615 = vunpack.c.l.b16 %v395
        %v616 = vunpack.c.h.b16 %v395
        %v617 = vunpack.c.l.b16 %v396
        %v618 = vunpack.c.h.b16 %v396
        %v619 = vunpack.c.l.b16 %v397
        %v620 = vunpack.c.h.b16 %v397
        %v621 = vunpack.c.l.b16 %v398
        %v622 = vunpack.c.h.b16 %v398
        %v623 = vunpack.c.l.b16 %v399
        %v624 = vunpack.c.h.b16 %v399
        %v625 = vunpack.c.l.b16 %v400
        %v626 = vunpack.c.h.b16 %v400
        %v627 = vunpack.c.l.b16 %v401
        %v628 = vunpack.c.h.b16 %v401
        %v629 = vunpack.c.l.b16 %v402
        %v630 = vunpack.c.h.b16 %v402
        %v631 = vunpack.c.l.b16 %v403
        %v632 = vunpack.c.h.b16 %v403
        %v633 = vunpack.c.l.b16 %v404
        %v634 = vunpack.c.h.b16 %v404
        %v635 = vunpack.c.l.b16 %v405
        %v636 = vunpack.c.h.b16 %v405
        %v637 = vunpack.c.l.b16 %v406
        %v638 = vunpack.c.h.b16 %v406
        %v639 = vunpack.c.l.b16 %v407
        %v640 = vunpack.c.h.b16 %v407
        %v641 = vunpack.c.l.b16 %v408
        %v642 = vunpack.c.h.b16 %v408
        %v643 = vunpack.c.l.b16 %v409
        %v644 = vunpack.c.h.b16 %v409
        %v645 = vunpack.c.l.b16 %v410
        %v646 = vunpack.c.h.b16 %v410
        %v647 = vunpack.c.l.b16 %v411
        %v648 = vunpack.c.h.b16 %v411
        %v649 = vunpack.c.l.b16 %v412
        %v650 = vunpack.c.h.b16 %v412
        %v651 = vunpack.c.l.b16 %v413
        %v652 = vunpack.c.h.b16 %v413
        %v653 = vunpack.c.l.b16 %v414
        %v654 = vunpack.c.h.b16 %v414
        %v655 = vunpack.c.l.b16 %v415
        %v656 = vunpack.c.h.b16 %v415
        %v657 = vunpack.c.l.b16 %v416
        %v658 = vunpack.c.h.b16 %v416
        %v659 = vunpack.c.l.b16 %v417
        %v660 = vunpack.c.h.b16 %v417
        %v661 = vunpack.c.l.b16 %v418
        %v662 = vunpack.c.h.b16 %v418
        %v663 = vunpack.c.l.b16 %v419
        %v664 = vunpack.c.h.b16 %v419
        %v665 = vunpack.c.l.b16 %v420
        %v666 = vunpack.c.h.b16 %v420
        %v667 = vunpack.c.l.b16 %v421
        %v668 = vunpack.c.h.b16 %v421
        %v669 = vunpack.c.l.b16 %v422
        %v670 = vunpack.c.h.b16 %v422
        %v671 = vunpack.c.l.b16 %v423
        %v672 = vunpack.c.h.b16 %v423
        %v673 = vunpack.c.l.b16 %v424
        %v674 = vunpack.c.h.b16 %v424
        %v675 = vunpack.c.l.b16 %v425
        %v676 = vunpack.c.h.b16 %v425
        %v677 = vunpack.c.l.b16 %v426
        %v678 = vunpack.c.h.b16 %v426
        %v679 = vunpack.c.l.b16 %v427
        %v680 = vunpack.c.h.b16 %v427
        %v681 = vunpack.c.l.b16 %v428
        %v682 = vunpack.c.h.b16 %v428
        %v683 = vunpack.c.l.b16 %v429
        %v684 = vunpack.c.h.b16 %v429
        %v685 = vunpack.c.l.b16 %v430
        %v686 = vunpack.c.h.b16 %v430
        %v687 = vunpack.c.l.b16 %v431
        %v688 = vunpack.c.h.b16 %v431
        %v689 = vunpack.c.l.b16 %v432
        %v690 = vunpack.c.h.b16 %v432
        %v691 = vunpack.c.l.b16 %v433
        %v692 = vunpack.c.h.b16 %v433
        %v693 = vunpack.c.l.b16 %v434
        %v694 = vunpack.c.h.b16 %v434
        %v695 = vunpack.c.l.b16 %v435
        %v696 = vunpack.c.h.b16 %v435
        %v697 = vunpack.c.l.b16 %v436
        %v698 = vunpack.c.h.b16 %v436
        %v699 = vunpack.c.l.b16 %v437
        %v700 = vunpack.c.h.b16 %v437
        %v701 = vunpack.c.l.b16 %v438
        %v702 = vunpack.c.h.b16 %v438
        %v703 = vunpack.c.l.b16 %v439
        %v704 = vunpack.c.h.b16 %v439
        %v705 = vunpack.c.l.b16 %v440
        %v706 = vunpack.c.h.b16 %v440
        %v707 = vunpack.c.l.b16 %v441
        %v708 = vunpack.c.h.b16 %v441
        %v709 = vunpack.c.l.b16 %v442
        %v710 = vunpack.c.h.b16 %v442
        %v711 = vunpack.c.l.b16 %v443
        %v712 = vunpack.c.h.b16 %v443
        %v713 = vunpack.c.l.b16 %v444
        %v714 = vunpack.c.h.b16 %v444
        %v715 = vunpack.c.l.b16 %v445
        %v716 = vunpack.c.h.b16 %v445
        %v717 = vunpack.c.l.b16 %v446
        %v718 = vunpack.c.h.b16 %v446
        %v719 = vunpack.c.l.b16 %v447
        %v720 = vunpack.c.h.b16 %v447
        %v721 = vunpack.c.l.b16 %v448
        %v722 = vunpack.c.h.b16 %v448
        %v723 = vunpack.c.l.b16 %v449
        %v724 = vunpack.c.h.b16 %v449
        %v725 = vunpack.c.l.b16 %v450
        %v726 = vunpack.c.h.b16 %v450
        %v727 = vunpack.c.l.b16 %v451
        %v728 = vunpack.c.h.b16 %v451
        %v729 = vunpack.c.l.b16 %v452
        %v730 = vunpack.c.h.b16 %v452
        %v731 = vunpack.c.l.b16 %v453
        %v732 = vunpack.c.h.b16 %v453
        %v733 = vunpack.c.l.b16 %v454
        %v734 = vunpack.c.h.b16 %v454
        %v735 = vunpack.c.l.b16 %v455
        %v736 = vunpack.c.h.b16 %v455
        %v737 = vunpack.c.l.b16 %v456
        %v738 = vunpack.c.h.b16 %v456
        %v739 = vpack.c.b16 %v615, %v611
        %v740 = vpack.c.b16 %v616, %v612
        %v741 = vpack.c.b16 %v617, %v613
        %v742 = vpack.c.b16 %v618, %v614
        %v743 = vpack.c.b16 %v623, %v619
        %v744 = vpack.c.b16 %v624, %v620
        %v745 = vpack.c.b16 %v625, %v621
        %v746 = vpack.c.b16 %v626, %v622
        %v747 = vpack.c.b16 %v631, %v627
        %v748 = vpack.c.b16 %v632, %v628
        %v749 = vpack.c.b16 %v633, %v629
        %v750 = vpack.c.b16 %v634, %v630
        %v751 = vpack.c.b16 %v639, %v635
        %v752 = vpack.c.b16 %v640, %v636
        %v753 = vpack.c.b16 %v641, %v637
        %v754 = vpack.c.b16 %v642, %v638
        %v755 = vpack.c.b16 %v647, %v643
        %v756 = vpack.c.b16 %v648, %v644
        %v757 = vpack.c.b16 %v649, %v645
        %v758 = vpack.c.b16 %v650, %v646
        %v759 = vpack.c.b16 %v655, %v651
        %v760 = vpack.c.b16 %v656, %v652
        %v761 = vpack.c.b16 %v657, %v653
        %v762 = vpack.c.b16 %v658, %v654
        %v763 = vpack.c.b16 %v663, %v659
        %v764 = vpack.c.b16 %v664, %v660
        %v765 = vpack.c.b16 %v665, %v661
        %v766 = vpack.c.b16 %v666, %v662
        %v767 = vpack.c.b16 %v671, %v667
        %v768 = vpack.c.b16 %v672, %v668
        %v769 = vpack.c.b16 %v673, %v669
        %v770 = vpack.c.b16 %v674, %v670
        %v771 = vpack.c.b16 %v679, %v675
        %v772 = vpack.c.b16 %v680, %v676
        %v773 = vpack.c.b16 %v681, %v677
        %v774 = vpack.c.b16 %v682, %v678
        %v775 = vpack.c.b16 %v687, %v683
        %v776 = vpack.c.b16 %v688, %v684
        %v777 = vpack.c.b16 %v689, %v685
        %v778 = vpack.c.b16 %v690, %v686
        %v779 = vpack.c.b16 %v695, %v691
        %v780 = vpack.c.b16 %v696, %v692
        %v781 = vpack.c.b16 %v697, %v693
        %v782 = vpack.c.b16 %v698, %v694
        %v783 = vpack.c.b16 %v703, %v699
        %v784 = vpack.c.b16 %v704, %v700
        %v785 = vpack.c.b16 %v705, %v701
        %v786 = vpack.c.b16 %v706, %v702
        %v787 = vpack.c.b16 %v711, %v707
        %v788 = vpack.c.b16 %v712, %v708
        %v789 = vpack.c.b16 %v713, %v709
        %v790 = vpack.c.b16 %v714, %v710
        %v791 = vpack.c.b16 %v719, %v715
        %v792 = vpack.c.b16 %v720, %v716
        %v793 = vpack.c.b16 %v721, %v717
        %v794 = vpack.c.b16 %v722, %v718
        %v795 = vpack.c.b16 %v727, %v723
        %v796 = vpack.c.b16 %v728, %v724
        %v797 = vpack.c.b16 %v729, %v725
        %v798 = vpack.c.b16 %v730, %v726
        %v799 = vpack.c.b16 %v735, %v731
        %v800 = vpack.c.b16 %v736, %v732
        %v801 = vpack.c.b16 %v737, %v733
        %v802 = vpack.c.b16 %v738, %v734
        %867 = vmatpush.bf16.msra.mxu0 %v767
        %868 = vmatpush.bf16.msra.mxu0 %v763
        %869 = vmatpush.bf16.msra.mxu0 %v759
        %870 = vmatpush.bf16.msra.mxu0 %v755
        %871 = vmatpush.bf16.msra.mxu0 %v751
        %872 = vmatpush.bf16.msra.mxu0 %v747
        %873 = vmatpush.bf16.msra.mxu0 %v743
        %874 = vmatpush.bf16.msra.mxu0 %v739
        %875 = vmatmul.bf16.gmra.mxu0 %v515
        %v876 = vpop.f32.mrf.mxu0
        %v877 = vadd.f32 %v459, %v876
        %v878 = vpop.f32.mrf.mxu0
        %v879 = vadd.f32 %v459, %v878
        %880 = vmatmul.bf16.gmra.mxu0 %v517
        %v881 = vpop.f32.mrf.mxu0
        %v882 = vadd.f32 %v459, %v881
        %v883 = vpop.f32.mrf.mxu0
        %v884 = vadd.f32 %v459, %v883
        %885 = vmatmul.bf16.gmra.mxu0 %v519
        %v886 = vpop.f32.mrf.mxu0
        %v887 = vadd.f32 %v459, %v886
        %v888 = vpop.f32.mrf.mxu0
        %v889 = vadd.f32 %v459, %v888
        %890 = vmatmul.bf16.gmra.mxu0 %v521
        %v891 = vpop.f32.mrf.mxu0
        %v892 = vadd.f32 %v459, %v891
        %v893 = vpop.f32.mrf.mxu0
        %v894 = vadd.f32 %v459, %v893
        %895 = vmatmul.bf16.gmra.mxu0 %v523
        %v896 = vpop.f32.mrf.mxu0
        %v897 = vadd.f32 %v459, %v896
        %v898 = vpop.f32.mrf.mxu0
        %v899 = vadd.f32 %v459, %v898
        %900 = vmatmul.bf16.gmra.mxu0 %v525
        %v901 = vpop.f32.mrf.mxu0
        %v902 = vadd.f32 %v459, %v901
        %v903 = vpop.f32.mrf.mxu0
        %v904 = vadd.f32 %v459, %v903
        %905 = vmatmul.bf16.gmra.mxu0 %v527
        %v906 = vpop.f32.mrf.mxu0
        %v907 = vadd.f32 %v459, %v906
        %v908 = vpop.f32.mrf.mxu0
        %v909 = vadd.f32 %v459, %v908
        %910 = vmatmul.bf16.gmra.mxu0 %v529
        %v911 = vpop.f32.mrf.mxu0
        %v912 = vadd.f32 %v459, %v911
        %v913 = vpop.f32.mrf.mxu0
        %v914 = vadd.f32 %v459, %v913
        %915 = vdwg.mxu0
        %916 = vmatpush.bf16.msra.mxu0 %v799
        %917 = vmatpush.bf16.msra.mxu0 %v795
        %918 = vmatpush.bf16.msra.mxu0 %v791
        %919 = vmatpush.bf16.msra.mxu0 %v787
        %920 = vmatpush.bf16.msra.mxu0 %v783
        %921 = vmatpush.bf16.msra.mxu0 %v779
        %922 = vmatpush.bf16.msra.mxu0 %v775
        %923 = vmatpush.bf16.msra.mxu0 %v771
        %924 = vmatmul.bf16.gmra.mxu0 %v516
        %v925 = vpop.f32.mrf.mxu0
        %v926 = vadd.f32 %v877, %v925
        %v927 = vpop.f32.mrf.mxu0
        %v928 = vadd.f32 %v879, %v927
        %929 = vmatmul.bf16.gmra.mxu0 %v518
        %v930 = vpop.f32.mrf.mxu0
        %v931 = vadd.f32 %v882, %v930
        %v932 = vpop.f32.mrf.mxu0
        %v933 = vadd.f32 %v884, %v932
        %934 = vmatmul.bf16.gmra.mxu0 %v520
        %v935 = vpop.f32.mrf.mxu0
        %v936 = vadd.f32 %v887, %v935
        %v937 = vpop.f32.mrf.mxu0
        %v938 = vadd.f32 %v889, %v937
        %939 = vmatmul.bf16.gmra.mxu0 %v522
        %v940 = vpop.f32.mrf.mxu0
        %v941 = vadd.f32 %v892, %v940
        %v942 = vpop.f32.mrf.mxu0
        %v943 = vadd.f32 %v894, %v942
        %944 = vmatmul.bf16.gmra.mxu0 %v524
        %v945 = vpop.f32.mrf.mxu0
        %v946 = vadd.f32 %v897, %v945
        %v947 = vpop.f32.mrf.mxu0
        %v948 = vadd.f32 %v899, %v947
        %949 = vmatmul.bf16.gmra.mxu0 %v526
        %v950 = vpop.f32.mrf.mxu0
        %v951 = vadd.f32 %v902, %v950
        %v952 = vpop.f32.mrf.mxu0
        %v953 = vadd.f32 %v904, %v952
        %954 = vmatmul.bf16.gmra.mxu0 %v528
        %v955 = vpop.f32.mrf.mxu0
        %v956 = vadd.f32 %v907, %v955
        %v957 = vpop.f32.mrf.mxu0
        %v958 = vadd.f32 %v909, %v957
        %959 = vmatmul.bf16.gmra.mxu0 %v530
        %v960 = vpop.f32.mrf.mxu0
        %v961 = vadd.f32 %v912, %v960
        %v962 = vpop.f32.mrf.mxu0
        %v963 = vadd.f32 %v914, %v962
        %964 = vdwg.mxu0
        %965 = vmatpush.bf16.msra.mxu0 %v768
        %966 = vmatpush.bf16.msra.mxu0 %v764
        %967 = vmatpush.bf16.msra.mxu0 %v760
        %968 = vmatpush.bf16.msra.mxu0 %v756
        %969 = vmatpush.bf16.msra.mxu0 %v752
        %970 = vmatpush.bf16.msra.mxu0 %v748
        %971 = vmatpush.bf16.msra.mxu0 %v744
        %972 = vmatpush.bf16.msra.mxu0 %v740
        %973 = vmatmul.bf16.gmra.mxu0 %v515
        %v974 = vpop.f32.mrf.mxu0
        %v975 = vadd.f32 %v460, %v974
        %v976 = vpop.f32.mrf.mxu0
        %v977 = vadd.f32 %v460, %v976
        %978 = vmatmul.bf16.gmra.mxu0 %v517
        %v979 = vpop.f32.mrf.mxu0
        %v980 = vadd.f32 %v460, %v979
        %v981 = vpop.f32.mrf.mxu0
        %v982 = vadd.f32 %v460, %v981
        %983 = vmatmul.bf16.gmra.mxu0 %v519
        %v984 = vpop.f32.mrf.mxu0
        %v985 = vadd.f32 %v460, %v984
        %v986 = vpop.f32.mrf.mxu0
        %v987 = vadd.f32 %v460, %v986
        %988 = vmatmul.bf16.gmra.mxu0 %v521
        %v989 = vpop.f32.mrf.mxu0
        %v990 = vadd.f32 %v460, %v989
        %v991 = vpop.f32.mrf.mxu0
        %v992 = vadd.f32 %v460, %v991
        %993 = vmatmul.bf16.gmra.mxu0 %v523
        %v994 = vpop.f32.mrf.mxu0
        %v995 = vadd.f32 %v460, %v994
        %v996 = vpop.f32.mrf.mxu0
        %v997 = vadd.f32 %v460, %v996
        %998 = vmatmul.bf16.gmra.mxu0 %v525
        %v999 = vpop.f32.mrf.mxu0
        %v1000 = vadd.f32 %v460, %v999
        %v1001 = vpop.f32.mrf.mxu0
        %v1002 = vadd.f32 %v460, %v1001
        %1003 = vmatmul.bf16.gmra.mxu0 %v527
        %v1004 = vpop.f32.mrf.mxu0
        %v1005 = vadd.f32 %v460, %v1004
        %v1006 = vpop.f32.mrf.mxu0
        %v1007 = vadd.f32 %v460, %v1006
        %1008 = vmatmul.bf16.gmra.mxu0 %v529
        %v1009 = vpop.f32.mrf.mxu0
        %v1010 = vadd.f32 %v460, %v1009
        %v1011 = vpop.f32.mrf.mxu0
        %v1012 = vadd.f32 %v460, %v1011
        %1013 = vdwg.mxu0
        %1014 = vmatpush.bf16.msra.mxu0 %v800
        %1015 = vmatpush.bf16.msra.mxu0 %v796
        %1016 = vmatpush.bf16.msra.mxu0 %v792
        %1017 = vmatpush.bf16.msra.mxu0 %v788
        %1018 = vmatpush.bf16.msra.mxu0 %v784
        %1019 = vmatpush.bf16.msra.mxu0 %v780
        %1020 = vmatpush.bf16.msra.mxu0 %v776
        %1021 = vmatpush.bf16.msra.mxu0 %v772
        %1022 = vmatmul.bf16.gmra.mxu0 %v516
        %v1023 = vpop.f32.mrf.mxu0
        %v1024 = vadd.f32 %v975, %v1023
        %v1025 = vpop.f32.mrf.mxu0
        %v1026 = vadd.f32 %v977, %v1025
        %1027 = vmatmul.bf16.gmra.mxu0 %v518
        %v1028 = vpop.f32.mrf.mxu0
        %v1029 = vadd.f32 %v980, %v1028
        %v1030 = vpop.f32.mrf.mxu0
        %v1031 = vadd.f32 %v982, %v1030
        %1032 = vmatmul.bf16.gmra.mxu0 %v520
        %v1033 = vpop.f32.mrf.mxu0
        %v1034 = vadd.f32 %v985, %v1033
        %v1035 = vpop.f32.mrf.mxu0
        %v1036 = vadd.f32 %v987, %v1035
        %1037 = vmatmul.bf16.gmra.mxu0 %v522
        %v1038 = vpop.f32.mrf.mxu0
        %v1039 = vadd.f32 %v990, %v1038
        %v1040 = vpop.f32.mrf.mxu0
        %v1041 = vadd.f32 %v992, %v1040
        %1042 = vmatmul.bf16.gmra.mxu0 %v524
        %v1043 = vpop.f32.mrf.mxu0
        %v1044 = vadd.f32 %v995, %v1043
        %v1045 = vpop.f32.mrf.mxu0
        %v1046 = vadd.f32 %v997, %v1045
        %1047 = vmatmul.bf16.gmra.mxu0 %v526
        %v1048 = vpop.f32.mrf.mxu0
        %v1049 = vadd.f32 %v1000, %v1048
        %v1050 = vpop.f32.mrf.mxu0
        %v1051 = vadd.f32 %v1002, %v1050
        %1052 = vmatmul.bf16.gmra.mxu0 %v528
        %v1053 = vpop.f32.mrf.mxu0
        %v1054 = vadd.f32 %v1005, %v1053
        %v1055 = vpop.f32.mrf.mxu0
        %v1056 = vadd.f32 %v1007, %v1055
        %1057 = vmatmul.bf16.gmra.mxu0 %v530
        %v1058 = vpop.f32.mrf.mxu0
        %v1059 = vadd.f32 %v1010, %v1058
        %v1060 = vpop.f32.mrf.mxu0
        %v1061 = vadd.f32 %v1012, %v1060
        %1062 = vdwg.mxu0
        %1063 = vmatpush.bf16.msra.mxu0 %v769
        %1064 = vmatpush.bf16.msra.mxu0 %v765
        %1065 = vmatpush.bf16.msra.mxu0 %v761
        %1066 = vmatpush.bf16.msra.mxu0 %v757
        %1067 = vmatpush.bf16.msra.mxu0 %v753
        %1068 = vmatpush.bf16.msra.mxu0 %v749
        %1069 = vmatpush.bf16.msra.mxu0 %v745
        %1070 = vmatpush.bf16.msra.mxu0 %v741
        %1071 = vmatmul.bf16.gmra.mxu0 %v515
        %v1072 = vpop.f32.mrf.mxu0
        %v1073 = vadd.f32 %v461, %v1072
        %v1074 = vpop.f32.mrf.mxu0
        %v1075 = vadd.f32 %v461, %v1074
        %1076 = vmatmul.bf16.gmra.mxu0 %v517
        %v1077 = vpop.f32.mrf.mxu0
        %v1078 = vadd.f32 %v461, %v1077
        %v1079 = vpop.f32.mrf.mxu0
        %v1080 = vadd.f32 %v461, %v1079
        %1081 = vmatmul.bf16.gmra.mxu0 %v519
        %v1082 = vpop.f32.mrf.mxu0
        %v1083 = vadd.f32 %v461, %v1082
        %v1084 = vpop.f32.mrf.mxu0
        %v1085 = vadd.f32 %v461, %v1084
        %1086 = vmatmul.bf16.gmra.mxu0 %v521
        %v1087 = vpop.f32.mrf.mxu0
        %v1088 = vadd.f32 %v461, %v1087
        %v1089 = vpop.f32.mrf.mxu0
        %v1090 = vadd.f32 %v461, %v1089
        %1091 = vmatmul.bf16.gmra.mxu0 %v523
        %v1092 = vpop.f32.mrf.mxu0
        %v1093 = vadd.f32 %v461, %v1092
        %v1094 = vpop.f32.mrf.mxu0
        %v1095 = vadd.f32 %v461, %v1094
        %1096 = vmatmul.bf16.gmra.mxu0 %v525
        %v1097 = vpop.f32.mrf.mxu0
        %v1098 = vadd.f32 %v461, %v1097
        %v1099 = vpop.f32.mrf.mxu0
        %v1100 = vadd.f32 %v461, %v1099
        %1101 = vmatmul.bf16.gmra.mxu0 %v527
        %v1102 = vpop.f32.mrf.mxu0
        %v1103 = vadd.f32 %v461, %v1102
        %v1104 = vpop.f32.mrf.mxu0
        %v1105 = vadd.f32 %v461, %v1104
        %1106 = vmatmul.bf16.gmra.mxu0 %v529
        %v1107 = vpop.f32.mrf.mxu0
        %v1108 = vadd.f32 %v461, %v1107
        %v1109 = vpop.f32.mrf.mxu0
        %v1110 = vadd.f32 %v461, %v1109
        %1111 = vdwg.mxu0
        %1112 = vmatpush.bf16.msra.mxu0 %v801
        %1113 = vmatpush.bf16.msra.mxu0 %v797
        %1114 = vmatpush.bf16.msra.mxu0 %v793
        %1115 = vmatpush.bf16.msra.mxu0 %v789
        %1116 = vmatpush.bf16.msra.mxu0 %v785
        %1117 = vmatpush.bf16.msra.mxu0 %v781
        %1118 = vmatpush.bf16.msra.mxu0 %v777
        %1119 = vmatpush.bf16.msra.mxu0 %v773
        %1120 = vmatmul.bf16.gmra.mxu0 %v516
        %v1121 = vpop.f32.mrf.mxu0
        %v1122 = vadd.f32 %v1073, %v1121
        %v1123 = vpop.f32.mrf.mxu0
        %v1124 = vadd.f32 %v1075, %v1123
        %1125 = vmatmul.bf16.gmra.mxu0 %v518
        %v1126 = vpop.f32.mrf.mxu0
        %v1127 = vadd.f32 %v1078, %v1126
        %v1128 = vpop.f32.mrf.mxu0
        %v1129 = vadd.f32 %v1080, %v1128
        %1130 = vmatmul.bf16.gmra.mxu0 %v520
        %v1131 = vpop.f32.mrf.mxu0
        %v1132 = vadd.f32 %v1083, %v1131
        %v1133 = vpop.f32.mrf.mxu0
        %v1134 = vadd.f32 %v1085, %v1133
        %1135 = vmatmul.bf16.gmra.mxu0 %v522
        %v1136 = vpop.f32.mrf.mxu0
        %v1137 = vadd.f32 %v1088, %v1136
        %v1138 = vpop.f32.mrf.mxu0
        %v1139 = vadd.f32 %v1090, %v1138
        %1140 = vmatmul.bf16.gmra.mxu0 %v524
        %v1141 = vpop.f32.mrf.mxu0
        %v1142 = vadd.f32 %v1093, %v1141
        %v1143 = vpop.f32.mrf.mxu0
        %v1144 = vadd.f32 %v1095, %v1143
        %1145 = vmatmul.bf16.gmra.mxu0 %v526
        %v1146 = vpop.f32.mrf.mxu0
        %v1147 = vadd.f32 %v1098, %v1146
        %v1148 = vpop.f32.mrf.mxu0
        %v1149 = vadd.f32 %v1100, %v1148
        %1150 = vmatmul.bf16.gmra.mxu0 %v528
        %v1151 = vpop.f32.mrf.mxu0
        %v1152 = vadd.f32 %v1103, %v1151
        %v1153 = vpop.f32.mrf.mxu0
        %v1154 = vadd.f32 %v1105, %v1153
        %1155 = vmatmul.bf16.gmra.mxu0 %v530
        %v1156 = vpop.f32.mrf.mxu0
        %v1157 = vadd.f32 %v1108, %v1156
        %v1158 = vpop.f32.mrf.mxu0
        %v1159 = vadd.f32 %v1110, %v1158
        %1160 = vdwg.mxu0
        %1161 = vmatpush.bf16.msra.mxu0 %v770
        %1162 = vmatpush.bf16.msra.mxu0 %v766
        %1163 = vmatpush.bf16.msra.mxu0 %v762
        %1164 = vmatpush.bf16.msra.mxu0 %v758
        %1165 = vmatpush.bf16.msra.mxu0 %v754
        %1166 = vmatpush.bf16.msra.mxu0 %v750
        %1167 = vmatpush.bf16.msra.mxu0 %v746
        %1168 = vmatpush.bf16.msra.mxu0 %v742
        %1169 = vmatmul.bf16.gmra.mxu0 %v515
        %v1170 = vpop.f32.mrf.mxu0
        %v1171 = vadd.f32 %v462, %v1170
        %v1172 = vpop.f32.mrf.mxu0
        %v1173 = vadd.f32 %v462, %v1172
        %1174 = vmatmul.bf16.gmra.mxu0 %v517
        %v1175 = vpop.f32.mrf.mxu0
        %v1176 = vadd.f32 %v462, %v1175
        %v1177 = vpop.f32.mrf.mxu0
        %v1178 = vadd.f32 %v462, %v1177
        %1179 = vmatmul.bf16.gmra.mxu0 %v519
        %v1180 = vpop.f32.mrf.mxu0
        %v1181 = vadd.f32 %v462, %v1180
        %v1182 = vpop.f32.mrf.mxu0
        %v1183 = vadd.f32 %v462, %v1182
        %1184 = vmatmul.bf16.gmra.mxu0 %v521
        %v1185 = vpop.f32.mrf.mxu0
        %v1186 = vadd.f32 %v462, %v1185
        %v1187 = vpop.f32.mrf.mxu0
        %v1188 = vadd.f32 %v462, %v1187
        %1189 = vmatmul.bf16.gmra.mxu0 %v523
        %v1190 = vpop.f32.mrf.mxu0
        %v1191 = vadd.f32 %v462, %v1190
        %v1192 = vpop.f32.mrf.mxu0
        %v1193 = vadd.f32 %v462, %v1192
        %1194 = vmatmul.bf16.gmra.mxu0 %v525
        %v1195 = vpop.f32.mrf.mxu0
        %v1196 = vadd.f32 %v462, %v1195
        %v1197 = vpop.f32.mrf.mxu0
        %v1198 = vadd.f32 %v462, %v1197
        %1199 = vmatmul.bf16.gmra.mxu0 %v527
        %v1200 = vpop.f32.mrf.mxu0
        %v1201 = vadd.f32 %v462, %v1200
        %v1202 = vpop.f32.mrf.mxu0
        %v1203 = vadd.f32 %v462, %v1202
        %1204 = vmatmul.bf16.gmra.mxu0 %v529
        %v1205 = vpop.f32.mrf.mxu0
        %v1206 = vadd.f32 %v462, %v1205
        %v1207 = vpop.f32.mrf.mxu0
        %v1208 = vadd.f32 %v462, %v1207
        %1209 = vdwg.mxu0
        %1210 = vmatpush.bf16.msra.mxu0 %v802
        %1211 = vmatpush.bf16.msra.mxu0 %v798
        %1212 = vmatpush.bf16.msra.mxu0 %v794
        %1213 = vmatpush.bf16.msra.mxu0 %v790
        %1214 = vmatpush.bf16.msra.mxu0 %v786
        %1215 = vmatpush.bf16.msra.mxu0 %v782
        %1216 = vmatpush.bf16.msra.mxu0 %v778
        %1217 = vmatpush.bf16.msra.mxu0 %v774
        %1218 = vmatmul.bf16.gmra.mxu0 %v516
        %v1219 = vpop.f32.mrf.mxu0
        %v1220 = vadd.f32 %v1171, %v1219
        %v1221 = vpop.f32.mrf.mxu0
        %v1222 = vadd.f32 %v1173, %v1221
        %1223 = vmatmul.bf16.gmra.mxu0 %v518
        %v1224 = vpop.f32.mrf.mxu0
        %v1225 = vadd.f32 %v1176, %v1224
        %v1226 = vpop.f32.mrf.mxu0
        %v1227 = vadd.f32 %v1178, %v1226
        %1228 = vmatmul.bf16.gmra.mxu0 %v520
        %v1229 = vpop.f32.mrf.mxu0
        %v1230 = vadd.f32 %v1181, %v1229
        %v1231 = vpop.f32.mrf.mxu0
        %v1232 = vadd.f32 %v1183, %v1231
        %1233 = vmatmul.bf16.gmra.mxu0 %v522
        %v1234 = vpop.f32.mrf.mxu0
        %v1235 = vadd.f32 %v1186, %v1234
        %v1236 = vpop.f32.mrf.mxu0
        %v1237 = vadd.f32 %v1188, %v1236
        %1238 = vmatmul.bf16.gmra.mxu0 %v524
        %v1239 = vpop.f32.mrf.mxu0
        %v1240 = vadd.f32 %v1191, %v1239
        %v1241 = vpop.f32.mrf.mxu0
        %v1242 = vadd.f32 %v1193, %v1241
        %1243 = vmatmul.bf16.gmra.mxu0 %v526
        %v1244 = vpop.f32.mrf.mxu0
        %v1245 = vadd.f32 %v1196, %v1244
        %v1246 = vpop.f32.mrf.mxu0
        %v1247 = vadd.f32 %v1198, %v1246
        %1248 = vmatmul.bf16.gmra.mxu0 %v528
        %v1249 = vpop.f32.mrf.mxu0
        %v1250 = vadd.f32 %v1201, %v1249
        %v1251 = vpop.f32.mrf.mxu0
        %v1252 = vadd.f32 %v1203, %v1251
        %1253 = vmatmul.bf16.gmra.mxu0 %v530
        %v1254 = vpop.f32.mrf.mxu0
        %v1255 = vadd.f32 %v1206, %v1254
        %v1256 = vpop.f32.mrf.mxu0
        %v1257 = vadd.f32 %v1208, %v1256
        %1258 = vdwg.mxu0
        %v1259 = vmax.f32 %v926, 0.0
        %v1260 = vmax.f32 %v1024, 0.0
        %v1261 = vmax.f32 %v1122, 0.0
        %v1262 = vmax.f32 %v1220, 0.0
        %v1263 = vmax.f32 %v928, 0.0
        %v1264 = vmax.f32 %v1026, 0.0
        %v1265 = vmax.f32 %v1124, 0.0
        %v1266 = vmax.f32 %v1222, 0.0
        %v1267 = vmax.f32 %v931, 0.0
        %v1268 = vmax.f32 %v1029, 0.0
        %v1269 = vmax.f32 %v1127, 0.0
        %v1270 = vmax.f32 %v1225, 0.0
        %v1271 = vmax.f32 %v933, 0.0
        %v1272 = vmax.f32 %v1031, 0.0
        %v1273 = vmax.f32 %v1129, 0.0
        %v1274 = vmax.f32 %v1227, 0.0
        %v1275 = vmax.f32 %v936, 0.0
        %v1276 = vmax.f32 %v1034, 0.0
        %v1277 = vmax.f32 %v1132, 0.0
        %v1278 = vmax.f32 %v1230, 0.0
        %v1279 = vmax.f32 %v938, 0.0
        %v1280 = vmax.f32 %v1036, 0.0
        %v1281 = vmax.f32 %v1134, 0.0
        %v1282 = vmax.f32 %v1232, 0.0
        %v1283 = vmax.f32 %v941, 0.0
        %v1284 = vmax.f32 %v1039, 0.0
        %v1285 = vmax.f32 %v1137, 0.0
        %v1286 = vmax.f32 %v1235, 0.0
        %v1287 = vmax.f32 %v943, 0.0
        %v1288 = vmax.f32 %v1041, 0.0
        %v1289 = vmax.f32 %v1139, 0.0
        %v1290 = vmax.f32 %v1237, 0.0
        %v1291 = vmax.f32 %v946, 0.0
        %v1292 = vmax.f32 %v1044, 0.0
        %v1293 = vmax.f32 %v1142, 0.0
        %v1294 = vmax.f32 %v1240, 0.0
        %v1295 = vmax.f32 %v948, 0.0
        %v1296 = vmax.f32 %v1046, 0.0
        %v1297 = vmax.f32 %v1144, 0.0
        %v1298 = vmax.f32 %v1242, 0.0
        %v1299 = vmax.f32 %v951, 0.0
        %v1300 = vmax.f32 %v1049, 0.0
        %v1301 = vmax.f32 %v1147, 0.0
        %v1302 = vmax.f32 %v1245, 0.0
        %v1303 = vmax.f32 %v953, 0.0
        %v1304 = vmax.f32 %v1051, 0.0
        %v1305 = vmax.f32 %v1149, 0.0
        %v1306 = vmax.f32 %v1247, 0.0
        %v1307 = vmax.f32 %v956, 0.0
        %v1308 = vmax.f32 %v1054, 0.0
        %v1309 = vmax.f32 %v1152, 0.0
        %v1310 = vmax.f32 %v1250, 0.0
        %v1311 = vmax.f32 %v958, 0.0
        %v1312 = vmax.f32 %v1056, 0.0
        %v1313 = vmax.f32 %v1154, 0.0
        %v1314 = vmax.f32 %v1252, 0.0
        %v1315 = vmax.f32 %v961, 0.0
        %v1316 = vmax.f32 %v1059, 0.0
        %v1317 = vmax.f32 %v1157, 0.0
        %v1318 = vmax.f32 %v1255, 0.0
        %v1319 = vmax.f32 %v963, 0.0
        %v1320 = vmax.f32 %v1061, 0.0
        %v1321 = vmax.f32 %v1159, 0.0
        %v1322 = vmax.f32 %v1257, 0.0
        %v1323 = vpack.c.bf16 %v1260, %v1259
        %v1324 = vpack.c.bf16 %v1262, %v1261
        %v1325 = vpack.c.bf16 %v1264, %v1263
        %v1326 = vpack.c.bf16 %v1266, %v1265
        %v1327 = vpack.c.bf16 %v1268, %v1267
        %v1328 = vpack.c.bf16 %v1270, %v1269
        %v1329 = vpack.c.bf16 %v1272, %v1271
        %v1330 = vpack.c.bf16 %v1274, %v1273
        %v1331 = vpack.c.bf16 %v1276, %v1275
        %v1332 = vpack.c.bf16 %v1278, %v1277
        %v1333 = vpack.c.bf16 %v1280, %v1279
        %v1334 = vpack.c.bf16 %v1282, %v1281
        %v1335 = vpack.c.bf16 %v1284, %v1283
        %v1336 = vpack.c.bf16 %v1286, %v1285
        %v1337 = vpack.c.bf16 %v1288, %v1287
        %v1338 = vpack.c.bf16 %v1290, %v1289
        %v1339 = vpack.c.bf16 %v1292, %v1291
        %v1340 = vpack.c.bf16 %v1294, %v1293
        %v1341 = vpack.c.bf16 %v1296, %v1295
        %v1342 = vpack.c.bf16 %v1298, %v1297
        %v1343 = vpack.c.bf16 %v1300, %v1299
        %v1344 = vpack.c.bf16 %v1302, %v1301
        %v1345 = vpack.c.bf16 %v1304, %v1303
        %v1346 = vpack.c.bf16 %v1306, %v1305
        %v1347 = vpack.c.bf16 %v1308, %v1307
        %v1348 = vpack.c.bf16 %v1310, %v1309
        %v1349 = vpack.c.bf16 %v1312, %v1311
        %v1350 = vpack.c.bf16 %v1314, %v1313
        %v1351 = vpack.c.bf16 %v1316, %v1315
        %v1352 = vpack.c.bf16 %v1318, %v1317
        %v1353 = vpack.c.bf16 %v1320, %v1319
        %v1354 = vpack.c.bf16 %v1322, %v1321
        %1355 = vst [vmem:[%s369] sm:$0xff] %v1323
        %1356 = vst [vmem:[%s369 + $0x8] sm:$0xff] %v1324
        %1357 = vst [vmem:[%s369 + $0x10] sm:$0xff] %v1325
        %1358 = vst [vmem:[%s369 + $0x18] sm:$0xff] %v1326
        %1359 = vst [vmem:[%s369 + $0x20] sm:$0xff] %v1327
        %1360 = vst [vmem:[%s369 + $0x28] sm:$0xff] %v1328
        %1361 = vst [vmem:[%s369 + $0x30] sm:$0xff] %v1329
        %1362 = vst [vmem:[%s369 + $0x38] sm:$0xff] %v1330
        %1363 = vst [vmem:[%s369 + $0x40] sm:$0xff] %v1331
        %1364 = vst [vmem:[%s369 + $0x48] sm:$0xff] %v1332
        %1365 = vst [vmem:[%s369 + $0x50] sm:$0xff] %v1333
        %1366 = vst [vmem:[%s369 + $0x58] sm:$0xff] %v1334
        %1367 = vst [vmem:[%s369 + $0x60] sm:$0xff] %v1335
        %1368 = vst [vmem:[%s369 + $0x68] sm:$0xff] %v1336
        %1369 = vst [vmem:[%s369 + $0x70] sm:$0xff] %v1337
        %1370 = vst [vmem:[%s369 + $0x78] sm:$0xff] %v1338
        %1371 = vst [vmem:[%s369 + $0x80] sm:$0xff] %v1339
        %1372 = vst [vmem:[%s369 + $0x88] sm:$0xff] %v1340
        %1373 = vst [vmem:[%s369 + $0x90] sm:$0xff] %v1341
        %1374 = vst [vmem:[%s369 + $0x98] sm:$0xff] %v1342
        %1375 = vst [vmem:[%s369 + $0xa0] sm:$0xff] %v1343
        %1376 = vst [vmem:[%s369 + $0xa8] sm:$0xff] %v1344
        %1377 = vst [vmem:[%s369 + $0xb0] sm:$0xff] %v1345
        %1378 = vst [vmem:[%s369 + $0xb8] sm:$0xff] %v1346
        %1379 = vst [vmem:[%s369 + $0xc0] sm:$0xff] %v1347
        %1380 = vst [vmem:[%s369 + $0xc8] sm:$0xff] %v1348
        %1381 = vst [vmem:[%s369 + $0xd0] sm:$0xff] %v1349
        %1382 = vst [vmem:[%s369 + $0xd8] sm:$0xff] %v1350
        %1383 = vst [vmem:[%s369 + $0xe0] sm:$0xff] %v1351
        %1384 = vst [vmem:[%s369 + $0xe8] sm:$0xff] %v1352
        %1385 = vst [vmem:[%s369 + $0xf0] sm:$0xff] %v1353
        %1386 = vst [vmem:[%s369 + $0xf8] sm:$0xff] %v1354
        %v1387 = vld [vmem:[#allocation8] sm:$0xff]
        %v1388 = vld [vmem:[#allocation8 + $0x8] sm:$0xff]
        %v1389 = vld [vmem:[#allocation8 + $0x10] sm:$0xff]
        %v1390 = vld [vmem:[#allocation8 + $0x18] sm:$0xff]
        %v1391 = vld [vmem:[#allocation8 + $0x20] sm:$0xff]
        %v1392 = vld [vmem:[#allocation8 + $0x28] sm:$0xff]
        %v1393 = vld [vmem:[#allocation8 + $0x30] sm:$0xff]
        %v1394 = vld [vmem:[#allocation8 + $0x38] sm:$0xff]
        %v1395 = vld [vmem:[#allocation8 + $0x40] sm:$0xff]
        %v1396 = vld [vmem:[#allocation8 + $0x48] sm:$0xff]
        %v1397 = vld [vmem:[#allocation8 + $0x50] sm:$0xff]
        %v1398 = vld [vmem:[#allocation8 + $0x58] sm:$0xff]
        %v1399 = vld [vmem:[#allocation8 + $0x60] sm:$0xff]
        %v1400 = vld [vmem:[#allocation8 + $0x68] sm:$0xff]
        %v1401 = vld [vmem:[#allocation8 + $0x70] sm:$0xff]
        %v1402 = vld [vmem:[#allocation8 + $0x78] sm:$0xff]
        %v1403 = vld [vmem:[#allocation8 + $0x80] sm:$0xff]
        %v1404 = vld [vmem:[#allocation8 + $0x88] sm:$0xff]
        %v1405 = vld [vmem:[#allocation8 + $0x90] sm:$0xff]
        %v1406 = vld [vmem:[#allocation8 + $0x98] sm:$0xff]
        %v1407 = vld [vmem:[#allocation8 + $0xa0] sm:$0xff]
        %v1408 = vld [vmem:[#allocation8 + $0xa8] sm:$0xff]
        %v1409 = vld [vmem:[#allocation8 + $0xb0] sm:$0xff]
        %v1410 = vld [vmem:[#allocation8 + $0xb8] sm:$0xff]
        %v1411 = vld [vmem:[#allocation8 + $0xc0] sm:$0xff]
        %v1412 = vld [vmem:[#allocation8 + $0xc8] sm:$0xff]
        %v1413 = vld [vmem:[#allocation8 + $0xd0] sm:$0xff]
        %v1414 = vld [vmem:[#allocation8 + $0xd8] sm:$0xff]
        %v1415 = vld [vmem:[#allocation8 + $0xe0] sm:$0xff]
        %v1416 = vld [vmem:[#allocation8 + $0xe8] sm:$0xff]
        %v1417 = vld [vmem:[#allocation8 + $0xf0] sm:$0xff]
        %v1418 = vld [vmem:[#allocation8 + $0xf8] sm:$0xff]
        %v1419 = vld [vmem:[#allocation8 + $0x100] sm:$0xff]
        %v1420 = vld [vmem:[#allocation8 + $0x108] sm:$0xff]
        %v1421 = vld [vmem:[#allocation8 + $0x110] sm:$0xff]
        %v1422 = vld [vmem:[#allocation8 + $0x118] sm:$0xff]
        %v1423 = vld [vmem:[#allocation8 + $0x120] sm:$0xff]
        %v1424 = vld [vmem:[#allocation8 + $0x128] sm:$0xff]
        %v1425 = vld [vmem:[#allocation8 + $0x130] sm:$0xff]
        %v1426 = vld [vmem:[#allocation8 + $0x138] sm:$0xff]
        %v1427 = vld [vmem:[#allocation8 + $0x140] sm:$0xff]
        %v1428 = vld [vmem:[#allocation8 + $0x148] sm:$0xff]
        %v1429 = vld [vmem:[#allocation8 + $0x150] sm:$0xff]
        %v1430 = vld [vmem:[#allocation8 + $0x158] sm:$0xff]
        %v1431 = vld [vmem:[#allocation8 + $0x160] sm:$0xff]
        %v1432 = vld [vmem:[#allocation8 + $0x168] sm:$0xff]
        %v1433 = vld [vmem:[#allocation8 + $0x170] sm:$0xff]
        %v1434 = vld [vmem:[#allocation8 + $0x178] sm:$0xff]
        %v1435 = vld [vmem:[#allocation8 + $0x180] sm:$0xff]
        %v1436 = vld [vmem:[#allocation8 + $0x188] sm:$0xff]
        %v1437 = vld [vmem:[#allocation8 + $0x190] sm:$0xff]
        %v1438 = vld [vmem:[#allocation8 + $0x198] sm:$0xff]
        %v1439 = vld [vmem:[#allocation8 + $0x1a0] sm:$0xff]
        %v1440 = vld [vmem:[#allocation8 + $0x1a8] sm:$0xff]
        %v1441 = vld [vmem:[#allocation8 + $0x1b0] sm:$0xff]
        %v1442 = vld [vmem:[#allocation8 + $0x1b8] sm:$0xff]
        %v1443 = vld [vmem:[#allocation8 + $0x1c0] sm:$0xff]
        %v1444 = vld [vmem:[#allocation8 + $0x1c8] sm:$0xff]
        %v1445 = vld [vmem:[#allocation8 + $0x1d0] sm:$0xff]
        %v1446 = vld [vmem:[#allocation8 + $0x1d8] sm:$0xff]
        %v1447 = vld [vmem:[#allocation8 + $0x1e0] sm:$0xff]
        %v1448 = vld [vmem:[#allocation8 + $0x1e8] sm:$0xff]
        %v1449 = vld [vmem:[#allocation8 + $0x1f0] sm:$0xff]
        %v1450 = vld [vmem:[#allocation8 + $0x1f8] sm:$0xff]
        %v1483 = vunpack.c.l.b16 %v1323
        %v1484 = vunpack.c.h.b16 %v1323
        %v1485 = vunpack.c.l.b16 %v1324
        %v1486 = vunpack.c.h.b16 %v1324
        %v1487 = vunpack.c.l.b16 %v1325
        %v1488 = vunpack.c.h.b16 %v1325
        %v1489 = vunpack.c.l.b16 %v1326
        %v1490 = vunpack.c.h.b16 %v1326
        %v1491 = vunpack.c.l.b16 %v1327
        %v1492 = vunpack.c.h.b16 %v1327
        %v1493 = vunpack.c.l.b16 %v1328
        %v1494 = vunpack.c.h.b16 %v1328
        %v1495 = vunpack.c.l.b16 %v1329
        %v1496 = vunpack.c.h.b16 %v1329
        %v1497 = vunpack.c.l.b16 %v1330
        %v1498 = vunpack.c.h.b16 %v1330
        %v1499 = vunpack.c.l.b16 %v1331
        %v1500 = vunpack.c.h.b16 %v1331
        %v1501 = vunpack.c.l.b16 %v1332
        %v1502 = vunpack.c.h.b16 %v1332
        %v1503 = vunpack.c.l.b16 %v1333
        %v1504 = vunpack.c.h.b16 %v1333
        %v1505 = vunpack.c.l.b16 %v1334
        %v1506 = vunpack.c.h.b16 %v1334
        %v1507 = vunpack.c.l.b16 %v1335
        %v1508 = vunpack.c.h.b16 %v1335
        %v1509 = vunpack.c.l.b16 %v1336
        %v1510 = vunpack.c.h.b16 %v1336
        %v1511 = vunpack.c.l.b16 %v1337
        %v1512 = vunpack.c.h.b16 %v1337
        %v1513 = vunpack.c.l.b16 %v1338
        %v1514 = vunpack.c.h.b16 %v1338
        %v1515 = vunpack.c.l.b16 %v1339
        %v1516 = vunpack.c.h.b16 %v1339
        %v1517 = vunpack.c.l.b16 %v1340
        %v1518 = vunpack.c.h.b16 %v1340
        %v1519 = vunpack.c.l.b16 %v1341
        %v1520 = vunpack.c.h.b16 %v1341
        %v1521 = vunpack.c.l.b16 %v1342
        %v1522 = vunpack.c.h.b16 %v1342
        %v1523 = vunpack.c.l.b16 %v1343
        %v1524 = vunpack.c.h.b16 %v1343
        %v1525 = vunpack.c.l.b16 %v1344
        %v1526 = vunpack.c.h.b16 %v1344
        %v1527 = vunpack.c.l.b16 %v1345
        %v1528 = vunpack.c.h.b16 %v1345
        %v1529 = vunpack.c.l.b16 %v1346
        %v1530 = vunpack.c.h.b16 %v1346
        %v1531 = vunpack.c.l.b16 %v1347
        %v1532 = vunpack.c.h.b16 %v1347
        %v1533 = vunpack.c.l.b16 %v1348
        %v1534 = vunpack.c.h.b16 %v1348
        %v1535 = vunpack.c.l.b16 %v1349
        %v1536 = vunpack.c.h.b16 %v1349
        %v1537 = vunpack.c.l.b16 %v1350
        %v1538 = vunpack.c.h.b16 %v1350
        %v1539 = vunpack.c.l.b16 %v1351
        %v1540 = vunpack.c.h.b16 %v1351
        %v1541 = vunpack.c.l.b16 %v1352
        %v1542 = vunpack.c.h.b16 %v1352
        %v1543 = vunpack.c.l.b16 %v1353
        %v1544 = vunpack.c.h.b16 %v1353
        %v1545 = vunpack.c.l.b16 %v1354
        %v1546 = vunpack.c.h.b16 %v1354
        %v1547 = vpack.c.b16 %v1487, %v1483
        %v1548 = vpack.c.b16 %v1488, %v1484
        %v1549 = vpack.c.b16 %v1489, %v1485
        %v1550 = vpack.c.b16 %v1490, %v1486
        %v1551 = vpack.c.b16 %v1495, %v1491
        %v1552 = vpack.c.b16 %v1496, %v1492
        %v1553 = vpack.c.b16 %v1497, %v1493
        %v1554 = vpack.c.b16 %v1498, %v1494
        %v1555 = vpack.c.b16 %v1503, %v1499
        %v1556 = vpack.c.b16 %v1504, %v1500
        %v1557 = vpack.c.b16 %v1505, %v1501
        %v1558 = vpack.c.b16 %v1506, %v1502
        %v1559 = vpack.c.b16 %v1511, %v1507
        %v1560 = vpack.c.b16 %v1512, %v1508
        %v1561 = vpack.c.b16 %v1513, %v1509
        %v1562 = vpack.c.b16 %v1514, %v1510
        %v1563 = vpack.c.b16 %v1519, %v1515
        %v1564 = vpack.c.b16 %v1520, %v1516
        %v1565 = vpack.c.b16 %v1521, %v1517
        %v1566 = vpack.c.b16 %v1522, %v1518
        %v1567 = vpack.c.b16 %v1527, %v1523
        %v1568 = vpack.c.b16 %v1528, %v1524
        %v1569 = vpack.c.b16 %v1529, %v1525
        %v1570 = vpack.c.b16 %v1530, %v1526
        %v1571 = vpack.c.b16 %v1535, %v1531
        %v1572 = vpack.c.b16 %v1536, %v1532
        %v1573 = vpack.c.b16 %v1537, %v1533
        %v1574 = vpack.c.b16 %v1538, %v1534
        %v1575 = vpack.c.b16 %v1543, %v1539
        %v1576 = vpack.c.b16 %v1544, %v1540
        %v1577 = vpack.c.b16 %v1545, %v1541
        %v1578 = vpack.c.b16 %v1546, %v1542
        %v1675 = vunpack.c.l.b16 %v1387
        %v1676 = vunpack.c.h.b16 %v1387
        %v1677 = vunpack.c.l.b16 %v1388
        %v1678 = vunpack.c.h.b16 %v1388
        %v1679 = vunpack.c.l.b16 %v1389
        %v1680 = vunpack.c.h.b16 %v1389
        %v1681 = vunpack.c.l.b16 %v1390
        %v1682 = vunpack.c.h.b16 %v1390
        %v1683 = vunpack.c.l.b16 %v1391
        %v1684 = vunpack.c.h.b16 %v1391
        %v1685 = vunpack.c.l.b16 %v1392
        %v1686 = vunpack.c.h.b16 %v1392
        %v1687 = vunpack.c.l.b16 %v1393
        %v1688 = vunpack.c.h.b16 %v1393
        %v1689 = vunpack.c.l.b16 %v1394
        %v1690 = vunpack.c.h.b16 %v1394
        %v1691 = vunpack.c.l.b16 %v1395
        %v1692 = vunpack.c.h.b16 %v1395
        %v1693 = vunpack.c.l.b16 %v1396
        %v1694 = vunpack.c.h.b16 %v1396
        %v1695 = vunpack.c.l.b16 %v1397
        %v1696 = vunpack.c.h.b16 %v1397
        %v1697 = vunpack.c.l.b16 %v1398
        %v1698 = vunpack.c.h.b16 %v1398
        %v1699 = vunpack.c.l.b16 %v1399
        %v1700 = vunpack.c.h.b16 %v1399
        %v1701 = vunpack.c.l.b16 %v1400
        %v1702 = vunpack.c.h.b16 %v1400
        %v1703 = vunpack.c.l.b16 %v1401
        %v1704 = vunpack.c.h.b16 %v1401
        %v1705 = vunpack.c.l.b16 %v1402
        %v1706 = vunpack.c.h.b16 %v1402
        %v1707 = vunpack.c.l.b16 %v1403
        %v1708 = vunpack.c.h.b16 %v1403
        %v1709 = vunpack.c.l.b16 %v1404
        %v1710 = vunpack.c.h.b16 %v1404
        %v1711 = vunpack.c.l.b16 %v1405
        %v1712 = vunpack.c.h.b16 %v1405
        %v1713 = vunpack.c.l.b16 %v1406
        %v1714 = vunpack.c.h.b16 %v1406
        %v1715 = vunpack.c.l.b16 %v1407
        %v1716 = vunpack.c.h.b16 %v1407
        %v1717 = vunpack.c.l.b16 %v1408
        %v1718 = vunpack.c.h.b16 %v1408
        %v1719 = vunpack.c.l.b16 %v1409
        %v1720 = vunpack.c.h.b16 %v1409
        %v1721 = vunpack.c.l.b16 %v1410
        %v1722 = vunpack.c.h.b16 %v1410
        %v1723 = vunpack.c.l.b16 %v1411
        %v1724 = vunpack.c.h.b16 %v1411
        %v1725 = vunpack.c.l.b16 %v1412
        %v1726 = vunpack.c.h.b16 %v1412
        %v1727 = vunpack.c.l.b16 %v1413
        %v1728 = vunpack.c.h.b16 %v1413
        %v1729 = vunpack.c.l.b16 %v1414
        %v1730 = vunpack.c.h.b16 %v1414
        %v1731 = vunpack.c.l.b16 %v1415
        %v1732 = vunpack.c.h.b16 %v1415
        %v1733 = vunpack.c.l.b16 %v1416
        %v1734 = vunpack.c.h.b16 %v1416
        %v1735 = vunpack.c.l.b16 %v1417
        %v1736 = vunpack.c.h.b16 %v1417
        %v1737 = vunpack.c.l.b16 %v1418
        %v1738 = vunpack.c.h.b16 %v1418
        %v1739 = vunpack.c.l.b16 %v1419
        %v1740 = vunpack.c.h.b16 %v1419
        %v1741 = vunpack.c.l.b16 %v1420
        %v1742 = vunpack.c.h.b16 %v1420
        %v1743 = vunpack.c.l.b16 %v1421
        %v1744 = vunpack.c.h.b16 %v1421
        %v1745 = vunpack.c.l.b16 %v1422
        %v1746 = vunpack.c.h.b16 %v1422
        %v1747 = vunpack.c.l.b16 %v1423
        %v1748 = vunpack.c.h.b16 %v1423
        %v1749 = vunpack.c.l.b16 %v1424
        %v1750 = vunpack.c.h.b16 %v1424
        %v1751 = vunpack.c.l.b16 %v1425
        %v1752 = vunpack.c.h.b16 %v1425
        %v1753 = vunpack.c.l.b16 %v1426
        %v1754 = vunpack.c.h.b16 %v1426
        %v1755 = vunpack.c.l.b16 %v1427
        %v1756 = vunpack.c.h.b16 %v1427
        %v1757 = vunpack.c.l.b16 %v1428
        %v1758 = vunpack.c.h.b16 %v1428
        %v1759 = vunpack.c.l.b16 %v1429
        %v1760 = vunpack.c.h.b16 %v1429
        %v1761 = vunpack.c.l.b16 %v1430
        %v1762 = vunpack.c.h.b16 %v1430
        %v1763 = vunpack.c.l.b16 %v1431
        %v1764 = vunpack.c.h.b16 %v1431
        %v1765 = vunpack.c.l.b16 %v1432
        %v1766 = vunpack.c.h.b16 %v1432
        %v1767 = vunpack.c.l.b16 %v1433
        %v1768 = vunpack.c.h.b16 %v1433
        %v1769 = vunpack.c.l.b16 %v1434
        %v1770 = vunpack.c.h.b16 %v1434
        %v1771 = vunpack.c.l.b16 %v1435
        %v1772 = vunpack.c.h.b16 %v1435
        %v1773 = vunpack.c.l.b16 %v1436
        %v1774 = vunpack.c.h.b16 %v1436
        %v1775 = vunpack.c.l.b16 %v1437
        %v1776 = vunpack.c.h.b16 %v1437
        %v1777 = vunpack.c.l.b16 %v1438
        %v1778 = vunpack.c.h.b16 %v1438
        %v1779 = vunpack.c.l.b16 %v1439
        %v1780 = vunpack.c.h.b16 %v1439
        %v1781 = vunpack.c.l.b16 %v1440
        %v1782 = vunpack.c.h.b16 %v1440
        %v1783 = vunpack.c.l.b16 %v1441
        %v1784 = vunpack.c.h.b16 %v1441
        %v1785 = vunpack.c.l.b16 %v1442
        %v1786 = vunpack.c.h.b16 %v1442
        %v1787 = vunpack.c.l.b16 %v1443
        %v1788 = vunpack.c.h.b16 %v1443
        %v1789 = vunpack.c.l.b16 %v1444
        %v1790 = vunpack.c.h.b16 %v1444
        %v1791 = vunpack.c.l.b16 %v1445
        %v1792 = vunpack.c.h.b16 %v1445
        %v1793 = vunpack.c.l.b16 %v1446
        %v1794 = vunpack.c.h.b16 %v1446
        %v1795 = vunpack.c.l.b16 %v1447
        %v1796 = vunpack.c.h.b16 %v1447
        %v1797 = vunpack.c.l.b16 %v1448
        %v1798 = vunpack.c.h.b16 %v1448
        %v1799 = vunpack.c.l.b16 %v1449
        %v1800 = vunpack.c.h.b16 %v1449
        %v1801 = vunpack.c.l.b16 %v1450
        %v1802 = vunpack.c.h.b16 %v1450
        %v1803 = vpack.c.b16 %v1677, %v1675
        %v1804 = vpack.c.b16 %v1678, %v1676
        %v1805 = vpack.c.b16 %v1681, %v1679
        %v1806 = vpack.c.b16 %v1682, %v1680
        %v1807 = vpack.c.b16 %v1685, %v1683
        %v1808 = vpack.c.b16 %v1686, %v1684
        %v1809 = vpack.c.b16 %v1689, %v1687
        %v1810 = vpack.c.b16 %v1690, %v1688
        %v1811 = vpack.c.b16 %v1693, %v1691
        %v1812 = vpack.c.b16 %v1694, %v1692
        %v1813 = vpack.c.b16 %v1697, %v1695
        %v1814 = vpack.c.b16 %v1698, %v1696
        %v1815 = vpack.c.b16 %v1701, %v1699
        %v1816 = vpack.c.b16 %v1702, %v1700
        %v1817 = vpack.c.b16 %v1705, %v1703
        %v1818 = vpack.c.b16 %v1706, %v1704
        %v1819 = vpack.c.b16 %v1709, %v1707
        %v1820 = vpack.c.b16 %v1710, %v1708
        %v1821 = vpack.c.b16 %v1713, %v1711
        %v1822 = vpack.c.b16 %v1714, %v1712
        %v1823 = vpack.c.b16 %v1717, %v1715
        %v1824 = vpack.c.b16 %v1718, %v1716
        %v1825 = vpack.c.b16 %v1721, %v1719
        %v1826 = vpack.c.b16 %v1722, %v1720
        %v1827 = vpack.c.b16 %v1725, %v1723
        %v1828 = vpack.c.b16 %v1726, %v1724
        %v1829 = vpack.c.b16 %v1729, %v1727
        %v1830 = vpack.c.b16 %v1730, %v1728
        %v1831 = vpack.c.b16 %v1733, %v1731
        %v1832 = vpack.c.b16 %v1734, %v1732
        %v1833 = vpack.c.b16 %v1737, %v1735
        %v1834 = vpack.c.b16 %v1738, %v1736
        %v1835 = vpack.c.b16 %v1741, %v1739
        %v1836 = vpack.c.b16 %v1742, %v1740
        %v1837 = vpack.c.b16 %v1745, %v1743
        %v1838 = vpack.c.b16 %v1746, %v1744
        %v1839 = vpack.c.b16 %v1749, %v1747
        %v1840 = vpack.c.b16 %v1750, %v1748
        %v1841 = vpack.c.b16 %v1753, %v1751
        %v1842 = vpack.c.b16 %v1754, %v1752
        %v1843 = vpack.c.b16 %v1757, %v1755
        %v1844 = vpack.c.b16 %v1758, %v1756
        %v1845 = vpack.c.b16 %v1761, %v1759
        %v1846 = vpack.c.b16 %v1762, %v1760
        %v1847 = vpack.c.b16 %v1765, %v1763
        %v1848 = vpack.c.b16 %v1766, %v1764
        %v1849 = vpack.c.b16 %v1769, %v1767
        %v1850 = vpack.c.b16 %v1770, %v1768
        %v1851 = vpack.c.b16 %v1773, %v1771
        %v1852 = vpack.c.b16 %v1774, %v1772
        %v1853 = vpack.c.b16 %v1777, %v1775
        %v1854 = vpack.c.b16 %v1778, %v1776
        %v1855 = vpack.c.b16 %v1781, %v1779
        %v1856 = vpack.c.b16 %v1782, %v1780
        %v1857 = vpack.c.b16 %v1785, %v1783
        %v1858 = vpack.c.b16 %v1786, %v1784
        %v1859 = vpack.c.b16 %v1789, %v1787
        %v1860 = vpack.c.b16 %v1790, %v1788
        %v1861 = vpack.c.b16 %v1793, %v1791
        %v1862 = vpack.c.b16 %v1794, %v1792
        %v1863 = vpack.c.b16 %v1797, %v1795
        %v1864 = vpack.c.b16 %v1798, %v1796
        %v1865 = vpack.c.b16 %v1801, %v1799
        %v1866 = vpack.c.b16 %v1802, %v1800
        %1931 = vmatpush.bf16.msra.mxu0 %v1817
        %1932 = vmatpush.bf16.msra.mxu0 %v1815
        %1933 = vmatpush.bf16.msra.mxu0 %v1813
        %1934 = vmatpush.bf16.msra.mxu0 %v1811
        %1935 = vmatpush.bf16.msra.mxu0 %v1809
        %1936 = vmatpush.bf16.msra.mxu0 %v1807
        %1937 = vmatpush.bf16.msra.mxu0 %v1805
        %1938 = vmatpush.bf16.msra.mxu0 %v1803
        %1939 = vmatmul.bf16.gmra.mxu0 %v1547
        %v1940 = vpop.f32.mrf.mxu0
        %v1941 = vadd.f32 0.0, %v1940
        %v1942 = vpop.f32.mrf.mxu0
        %v1943 = vadd.f32 0.0, %v1942
        %1944 = vmatmul.bf16.gmra.mxu0 %v1551
        %v1945 = vpop.f32.mrf.mxu0
        %v1946 = vadd.f32 0.0, %v1945
        %v1947 = vpop.f32.mrf.mxu0
        %v1948 = vadd.f32 0.0, %v1947
        %1949 = vmatmul.bf16.gmra.mxu0 %v1555
        %v1950 = vpop.f32.mrf.mxu0
        %v1951 = vadd.f32 0.0, %v1950
        %v1952 = vpop.f32.mrf.mxu0
        %v1953 = vadd.f32 0.0, %v1952
        %1954 = vmatmul.bf16.gmra.mxu0 %v1559
        %v1955 = vpop.f32.mrf.mxu0
        %v1956 = vadd.f32 0.0, %v1955
        %v1957 = vpop.f32.mrf.mxu0
        %v1958 = vadd.f32 0.0, %v1957
        %1959 = vmatmul.bf16.gmra.mxu0 %v1563
        %v1960 = vpop.f32.mrf.mxu0
        %v1961 = vadd.f32 0.0, %v1960
        %v1962 = vpop.f32.mrf.mxu0
        %v1963 = vadd.f32 0.0, %v1962
        %1964 = vmatmul.bf16.gmra.mxu0 %v1567
        %v1965 = vpop.f32.mrf.mxu0
        %v1966 = vadd.f32 0.0, %v1965
        %v1967 = vpop.f32.mrf.mxu0
        %v1968 = vadd.f32 0.0, %v1967
        %1969 = vmatmul.bf16.gmra.mxu0 %v1571
        %v1970 = vpop.f32.mrf.mxu0
        %v1971 = vadd.f32 0.0, %v1970
        %v1972 = vpop.f32.mrf.mxu0
        %v1973 = vadd.f32 0.0, %v1972
        %1974 = vmatmul.bf16.gmra.mxu0 %v1575
        %v1975 = vpop.f32.mrf.mxu0
        %v1976 = vadd.f32 0.0, %v1975
        %v1977 = vpop.f32.mrf.mxu0
        %v1978 = vadd.f32 0.0, %v1977
        %1979 = vdwg.mxu0
        %1980 = vmatpush.bf16.msra.mxu0 %v1833
        %1981 = vmatpush.bf16.msra.mxu0 %v1831
        %1982 = vmatpush.bf16.msra.mxu0 %v1829
        %1983 = vmatpush.bf16.msra.mxu0 %v1827
        %1984 = vmatpush.bf16.msra.mxu0 %v1825
        %1985 = vmatpush.bf16.msra.mxu0 %v1823
        %1986 = vmatpush.bf16.msra.mxu0 %v1821
        %1987 = vmatpush.bf16.msra.mxu0 %v1819
        %1988 = vmatmul.bf16.gmra.mxu0 %v1548
        %v1989 = vpop.f32.mrf.mxu0
        %v1990 = vadd.f32 %v1941, %v1989
        %v1991 = vpop.f32.mrf.mxu0
        %v1992 = vadd.f32 %v1943, %v1991
        %1993 = vmatmul.bf16.gmra.mxu0 %v1552
        %v1994 = vpop.f32.mrf.mxu0
        %v1995 = vadd.f32 %v1946, %v1994
        %v1996 = vpop.f32.mrf.mxu0
        %v1997 = vadd.f32 %v1948, %v1996
        %1998 = vmatmul.bf16.gmra.mxu0 %v1556
        %v1999 = vpop.f32.mrf.mxu0
        %v2000 = vadd.f32 %v1951, %v1999
        %v2001 = vpop.f32.mrf.mxu0
        %v2002 = vadd.f32 %v1953, %v2001
        %2003 = vmatmul.bf16.gmra.mxu0 %v1560
        %v2004 = vpop.f32.mrf.mxu0
        %v2005 = vadd.f32 %v1956, %v2004
        %v2006 = vpop.f32.mrf.mxu0
        %v2007 = vadd.f32 %v1958, %v2006
        %2008 = vmatmul.bf16.gmra.mxu0 %v1564
        %v2009 = vpop.f32.mrf.mxu0
        %v2010 = vadd.f32 %v1961, %v2009
        %v2011 = vpop.f32.mrf.mxu0
        %v2012 = vadd.f32 %v1963, %v2011
        %2013 = vmatmul.bf16.gmra.mxu0 %v1568
        %v2014 = vpop.f32.mrf.mxu0
        %v2015 = vadd.f32 %v1966, %v2014
        %v2016 = vpop.f32.mrf.mxu0
        %v2017 = vadd.f32 %v1968, %v2016
        %2018 = vmatmul.bf16.gmra.mxu0 %v1572
        %v2019 = vpop.f32.mrf.mxu0
        %v2020 = vadd.f32 %v1971, %v2019
        %v2021 = vpop.f32.mrf.mxu0
        %v2022 = vadd.f32 %v1973, %v2021
        %2023 = vmatmul.bf16.gmra.mxu0 %v1576
        %v2024 = vpop.f32.mrf.mxu0
        %v2025 = vadd.f32 %v1976, %v2024
        %v2026 = vpop.f32.mrf.mxu0
        %v2027 = vadd.f32 %v1978, %v2026
        %2028 = vdwg.mxu0
        %2029 = vmatpush.bf16.msra.mxu0 %v1849
        %2030 = vmatpush.bf16.msra.mxu0 %v1847
        %2031 = vmatpush.bf16.msra.mxu0 %v1845
        %2032 = vmatpush.bf16.msra.mxu0 %v1843
        %2033 = vmatpush.bf16.msra.mxu0 %v1841
        %2034 = vmatpush.bf16.msra.mxu0 %v1839
        %2035 = vmatpush.bf16.msra.mxu0 %v1837
        %2036 = vmatpush.bf16.msra.mxu0 %v1835
        %2037 = vmatmul.bf16.gmra.mxu0 %v1549
        %v2038 = vpop.f32.mrf.mxu0
        %v2039 = vadd.f32 %v1990, %v2038
        %v2040 = vpop.f32.mrf.mxu0
        %v2041 = vadd.f32 %v1992, %v2040
        %2042 = vmatmul.bf16.gmra.mxu0 %v1553
        %v2043 = vpop.f32.mrf.mxu0
        %v2044 = vadd.f32 %v1995, %v2043
        %v2045 = vpop.f32.mrf.mxu0
        %v2046 = vadd.f32 %v1997, %v2045
        %2047 = vmatmul.bf16.gmra.mxu0 %v1557
        %v2048 = vpop.f32.mrf.mxu0
        %v2049 = vadd.f32 %v2000, %v2048
        %v2050 = vpop.f32.mrf.mxu0
        %v2051 = vadd.f32 %v2002, %v2050
        %2052 = vmatmul.bf16.gmra.mxu0 %v1561
        %v2053 = vpop.f32.mrf.mxu0
        %v2054 = vadd.f32 %v2005, %v2053
        %v2055 = vpop.f32.mrf.mxu0
        %v2056 = vadd.f32 %v2007, %v2055
        %2057 = vmatmul.bf16.gmra.mxu0 %v1565
        %v2058 = vpop.f32.mrf.mxu0
        %v2059 = vadd.f32 %v2010, %v2058
        %v2060 = vpop.f32.mrf.mxu0
        %v2061 = vadd.f32 %v2012, %v2060
        %2062 = vmatmul.bf16.gmra.mxu0 %v1569
        %v2063 = vpop.f32.mrf.mxu0
        %v2064 = vadd.f32 %v2015, %v2063
        %v2065 = vpop.f32.mrf.mxu0
        %v2066 = vadd.f32 %v2017, %v2065
        %2067 = vmatmul.bf16.gmra.mxu0 %v1573
        %v2068 = vpop.f32.mrf.mxu0
        %v2069 = vadd.f32 %v2020, %v2068
        %v2070 = vpop.f32.mrf.mxu0
        %v2071 = vadd.f32 %v2022, %v2070
        %2072 = vmatmul.bf16.gmra.mxu0 %v1577
        %v2073 = vpop.f32.mrf.mxu0
        %v2074 = vadd.f32 %v2025, %v2073
        %v2075 = vpop.f32.mrf.mxu0
        %v2076 = vadd.f32 %v2027, %v2075
        %2077 = vdwg.mxu0
        %2078 = vmatpush.bf16.msra.mxu0 %v1865
        %2079 = vmatpush.bf16.msra.mxu0 %v1863
        %2080 = vmatpush.bf16.msra.mxu0 %v1861
        %2081 = vmatpush.bf16.msra.mxu0 %v1859
        %2082 = vmatpush.bf16.msra.mxu0 %v1857
        %2083 = vmatpush.bf16.msra.mxu0 %v1855
        %2084 = vmatpush.bf16.msra.mxu0 %v1853
        %2085 = vmatpush.bf16.msra.mxu0 %v1851
        %2086 = vmatmul.bf16.gmra.mxu0 %v1550
        %v2087 = vpop.f32.mrf.mxu0
        %v2088 = vadd.f32 %v2039, %v2087
        %v2089 = vpop.f32.mrf.mxu0
        %v2090 = vadd.f32 %v2041, %v2089
        %2091 = vmatmul.bf16.gmra.mxu0 %v1554
        %v2092 = vpop.f32.mrf.mxu0
        %v2093 = vadd.f32 %v2044, %v2092
        %v2094 = vpop.f32.mrf.mxu0
        %v2095 = vadd.f32 %v2046, %v2094
        %2096 = vmatmul.bf16.gmra.mxu0 %v1558
        %v2097 = vpop.f32.mrf.mxu0
        %v2098 = vadd.f32 %v2049, %v2097
        %v2099 = vpop.f32.mrf.mxu0
        %v2100 = vadd.f32 %v2051, %v2099
        %2101 = vmatmul.bf16.gmra.mxu0 %v1562
        %v2102 = vpop.f32.mrf.mxu0
        %v2103 = vadd.f32 %v2054, %v2102
        %v2104 = vpop.f32.mrf.mxu0
        %v2105 = vadd.f32 %v2056, %v2104
        %2106 = vmatmul.bf16.gmra.mxu0 %v1566
        %v2107 = vpop.f32.mrf.mxu0
        %v2108 = vadd.f32 %v2059, %v2107
        %v2109 = vpop.f32.mrf.mxu0
        %v2110 = vadd.f32 %v2061, %v2109
        %2111 = vmatmul.bf16.gmra.mxu0 %v1570
        %v2112 = vpop.f32.mrf.mxu0
        %v2113 = vadd.f32 %v2064, %v2112
        %v2114 = vpop.f32.mrf.mxu0
        %v2115 = vadd.f32 %v2066, %v2114
        %2116 = vmatmul.bf16.gmra.mxu0 %v1574
        %v2117 = vpop.f32.mrf.mxu0
        %v2118 = vadd.f32 %v2069, %v2117
        %v2119 = vpop.f32.mrf.mxu0
        %v2120 = vadd.f32 %v2071, %v2119
        %2121 = vmatmul.bf16.gmra.mxu0 %v1578
        %v2122 = vpop.f32.mrf.mxu0
        %v2123 = vadd.f32 %v2074, %v2122
        %v2124 = vpop.f32.mrf.mxu0
        %v2125 = vadd.f32 %v2076, %v2124
        %2126 = vdwg.mxu0
        %2127 = vmatpush.bf16.msra.mxu0 %v1818
        %2128 = vmatpush.bf16.msra.mxu0 %v1816
        %2129 = vmatpush.bf16.msra.mxu0 %v1814
        %2130 = vmatpush.bf16.msra.mxu0 %v1812
        %2131 = vmatpush.bf16.msra.mxu0 %v1810
        %2132 = vmatpush.bf16.msra.mxu0 %v1808
        %2133 = vmatpush.bf16.msra.mxu0 %v1806
        %2134 = vmatpush.bf16.msra.mxu0 %v1804
        %2135 = vmatmul.bf16.gmra.mxu0 %v1547
        %v2136 = vpop.f32.mrf.mxu0
        %v2137 = vadd.f32 0.0, %v2136
        %v2138 = vpop.f32.mrf.mxu0
        %v2139 = vadd.f32 0.0, %v2138
        %2140 = vmatmul.bf16.gmra.mxu0 %v1551
        %v2141 = vpop.f32.mrf.mxu0
        %v2142 = vadd.f32 0.0, %v2141
        %v2143 = vpop.f32.mrf.mxu0
        %v2144 = vadd.f32 0.0, %v2143
        %2145 = vmatmul.bf16.gmra.mxu0 %v1555
        %v2146 = vpop.f32.mrf.mxu0
        %v2147 = vadd.f32 0.0, %v2146
        %v2148 = vpop.f32.mrf.mxu0
        %v2149 = vadd.f32 0.0, %v2148
        %2150 = vmatmul.bf16.gmra.mxu0 %v1559
        %v2151 = vpop.f32.mrf.mxu0
        %v2152 = vadd.f32 0.0, %v2151
        %v2153 = vpop.f32.mrf.mxu0
        %v2154 = vadd.f32 0.0, %v2153
        %2155 = vmatmul.bf16.gmra.mxu0 %v1563
        %v2156 = vpop.f32.mrf.mxu0
        %v2157 = vadd.f32 0.0, %v2156
        %v2158 = vpop.f32.mrf.mxu0
        %v2159 = vadd.f32 0.0, %v2158
        %2160 = vmatmul.bf16.gmra.mxu0 %v1567
        %v2161 = vpop.f32.mrf.mxu0
        %v2162 = vadd.f32 0.0, %v2161
        %v2163 = vpop.f32.mrf.mxu0
        %v2164 = vadd.f32 0.0, %v2163
        %2165 = vmatmul.bf16.gmra.mxu0 %v1571
        %v2166 = vpop.f32.mrf.mxu0
        %v2167 = vadd.f32 0.0, %v2166
        %v2168 = vpop.f32.mrf.mxu0
        %v2169 = vadd.f32 0.0, %v2168
        %2170 = vmatmul.bf16.gmra.mxu0 %v1575
        %v2171 = vpop.f32.mrf.mxu0
        %v2172 = vadd.f32 0.0, %v2171
        %v2173 = vpop.f32.mrf.mxu0
        %v2174 = vadd.f32 0.0, %v2173
        %2175 = vdwg.mxu0
        %2176 = vmatpush.bf16.msra.mxu0 %v1834
        %2177 = vmatpush.bf16.msra.mxu0 %v1832
        %2178 = vmatpush.bf16.msra.mxu0 %v1830
        %2179 = vmatpush.bf16.msra.mxu0 %v1828
        %2180 = vmatpush.bf16.msra.mxu0 %v1826
        %2181 = vmatpush.bf16.msra.mxu0 %v1824
        %2182 = vmatpush.bf16.msra.mxu0 %v1822
        %2183 = vmatpush.bf16.msra.mxu0 %v1820
        %2184 = vmatmul.bf16.gmra.mxu0 %v1548
        %v2185 = vpop.f32.mrf.mxu0
        %v2186 = vadd.f32 %v2137, %v2185
        %v2187 = vpop.f32.mrf.mxu0
        %v2188 = vadd.f32 %v2139, %v2187
        %2189 = vmatmul.bf16.gmra.mxu0 %v1552
        %v2190 = vpop.f32.mrf.mxu0
        %v2191 = vadd.f32 %v2142, %v2190
        %v2192 = vpop.f32.mrf.mxu0
        %v2193 = vadd.f32 %v2144, %v2192
        %2194 = vmatmul.bf16.gmra.mxu0 %v1556
        %v2195 = vpop.f32.mrf.mxu0
        %v2196 = vadd.f32 %v2147, %v2195
        %v2197 = vpop.f32.mrf.mxu0
        %v2198 = vadd.f32 %v2149, %v2197
        %2199 = vmatmul.bf16.gmra.mxu0 %v1560
        %v2200 = vpop.f32.mrf.mxu0
        %v2201 = vadd.f32 %v2152, %v2200
        %v2202 = vpop.f32.mrf.mxu0
        %v2203 = vadd.f32 %v2154, %v2202
        %2204 = vmatmul.bf16.gmra.mxu0 %v1564
        %v2205 = vpop.f32.mrf.mxu0
        %v2206 = vadd.f32 %v2157, %v2205
        %v2207 = vpop.f32.mrf.mxu0
        %v2208 = vadd.f32 %v2159, %v2207
        %2209 = vmatmul.bf16.gmra.mxu0 %v1568
        %v2210 = vpop.f32.mrf.mxu0
        %v2211 = vadd.f32 %v2162, %v2210
        %v2212 = vpop.f32.mrf.mxu0
        %v2213 = vadd.f32 %v2164, %v2212
        %2214 = vmatmul.bf16.gmra.mxu0 %v1572
        %v2215 = vpop.f32.mrf.mxu0
        %v2216 = vadd.f32 %v2167, %v2215
        %v2217 = vpop.f32.mrf.mxu0
        %v2218 = vadd.f32 %v2169, %v2217
        %2219 = vmatmul.bf16.gmra.mxu0 %v1576
        %v2220 = vpop.f32.mrf.mxu0
        %v2221 = vadd.f32 %v2172, %v2220
        %v2222 = vpop.f32.mrf.mxu0
        %v2223 = vadd.f32 %v2174, %v2222
        %2224 = vdwg.mxu0
        %2225 = vmatpush.bf16.msra.mxu0 %v1850
        %2226 = vmatpush.bf16.msra.mxu0 %v1848
        %2227 = vmatpush.bf16.msra.mxu0 %v1846
        %2228 = vmatpush.bf16.msra.mxu0 %v1844
        %2229 = vmatpush.bf16.msra.mxu0 %v1842
        %2230 = vmatpush.bf16.msra.mxu0 %v1840
        %2231 = vmatpush.bf16.msra.mxu0 %v1838
        %2232 = vmatpush.bf16.msra.mxu0 %v1836
        %2233 = vmatmul.bf16.gmra.mxu0 %v1549
        %v2234 = vpop.f32.mrf.mxu0
        %v2235 = vadd.f32 %v2186, %v2234
        %v2236 = vpop.f32.mrf.mxu0
        %v2237 = vadd.f32 %v2188, %v2236
        %2238 = vmatmul.bf16.gmra.mxu0 %v1553
        %v2239 = vpop.f32.mrf.mxu0
        %v2240 = vadd.f32 %v2191, %v2239
        %v2241 = vpop.f32.mrf.mxu0
        %v2242 = vadd.f32 %v2193, %v2241
        %2243 = vmatmul.bf16.gmra.mxu0 %v1557
        %v2244 = vpop.f32.mrf.mxu0
        %v2245 = vadd.f32 %v2196, %v2244
        %v2246 = vpop.f32.mrf.mxu0
        %v2247 = vadd.f32 %v2198, %v2246
        %2248 = vmatmul.bf16.gmra.mxu0 %v1561
        %v2249 = vpop.f32.mrf.mxu0
        %v2250 = vadd.f32 %v2201, %v2249
        %v2251 = vpop.f32.mrf.mxu0
        %v2252 = vadd.f32 %v2203, %v2251
        %2253 = vmatmul.bf16.gmra.mxu0 %v1565
        %v2254 = vpop.f32.mrf.mxu0
        %v2255 = vadd.f32 %v2206, %v2254
        %v2256 = vpop.f32.mrf.mxu0
        %v2257 = vadd.f32 %v2208, %v2256
        %2258 = vmatmul.bf16.gmra.mxu0 %v1569
        %v2259 = vpop.f32.mrf.mxu0
        %v2260 = vadd.f32 %v2211, %v2259
        %v2261 = vpop.f32.mrf.mxu0
        %v2262 = vadd.f32 %v2213, %v2261
        %2263 = vmatmul.bf16.gmra.mxu0 %v1573
        %v2264 = vpop.f32.mrf.mxu0
        %v2265 = vadd.f32 %v2216, %v2264
        %v2266 = vpop.f32.mrf.mxu0
        %v2267 = vadd.f32 %v2218, %v2266
        %2268 = vmatmul.bf16.gmra.mxu0 %v1577
        %v2269 = vpop.f32.mrf.mxu0
        %v2270 = vadd.f32 %v2221, %v2269
        %v2271 = vpop.f32.mrf.mxu0
        %v2272 = vadd.f32 %v2223, %v2271
        %2273 = vdwg.mxu0
        %2274 = vmatpush.bf16.msra.mxu0 %v1866
        %2275 = vmatpush.bf16.msra.mxu0 %v1864
        %2276 = vmatpush.bf16.msra.mxu0 %v1862
        %2277 = vmatpush.bf16.msra.mxu0 %v1860
        %2278 = vmatpush.bf16.msra.mxu0 %v1858
        %2279 = vmatpush.bf16.msra.mxu0 %v1856
        %2280 = vmatpush.bf16.msra.mxu0 %v1854
        %2281 = vmatpush.bf16.msra.mxu0 %v1852
        %2282 = vmatmul.bf16.gmra.mxu0 %v1550
        %v2283 = vpop.f32.mrf.mxu0
        %v2284 = vadd.f32 %v2235, %v2283
        %v2285 = vpop.f32.mrf.mxu0
        %v2286 = vadd.f32 %v2237, %v2285
        %2287 = vmatmul.bf16.gmra.mxu0 %v1554
        %v2288 = vpop.f32.mrf.mxu0
        %v2289 = vadd.f32 %v2240, %v2288
        %v2290 = vpop.f32.mrf.mxu0
        %v2291 = vadd.f32 %v2242, %v2290
        %2292 = vmatmul.bf16.gmra.mxu0 %v1558
        %v2293 = vpop.f32.mrf.mxu0
        %v2294 = vadd.f32 %v2245, %v2293
        %v2295 = vpop.f32.mrf.mxu0
        %v2296 = vadd.f32 %v2247, %v2295
        %2297 = vmatmul.bf16.gmra.mxu0 %v1562
        %v2298 = vpop.f32.mrf.mxu0
        %v2299 = vadd.f32 %v2250, %v2298
        %v2300 = vpop.f32.mrf.mxu0
        %v2301 = vadd.f32 %v2252, %v2300
        %2302 = vmatmul.bf16.gmra.mxu0 %v1566
        %v2303 = vpop.f32.mrf.mxu0
        %v2304 = vadd.f32 %v2255, %v2303
        %v2305 = vpop.f32.mrf.mxu0
        %v2306 = vadd.f32 %v2257, %v2305
        %2307 = vmatmul.bf16.gmra.mxu0 %v1570
        %v2308 = vpop.f32.mrf.mxu0
        %v2309 = vadd.f32 %v2260, %v2308
        %v2310 = vpop.f32.mrf.mxu0
        %v2311 = vadd.f32 %v2262, %v2310
        %2312 = vmatmul.bf16.gmra.mxu0 %v1574
        %v2313 = vpop.f32.mrf.mxu0
        %v2314 = vadd.f32 %v2265, %v2313
        %v2315 = vpop.f32.mrf.mxu0
        %v2316 = vadd.f32 %v2267, %v2315
        %2317 = vmatmul.bf16.gmra.mxu0 %v1578
        %v2318 = vpop.f32.mrf.mxu0
        %v2319 = vadd.f32 %v2270, %v2318
        %v2320 = vpop.f32.mrf.mxu0
        %v2321 = vadd.f32 %v2272, %v2320
        %2322 = vdwg.mxu0
        %p2323 = scmp.eq.s32.totalorder %s34, 0
        // Predicated region
        $region57: #{tpu_custom_call.1} parent=39 // pred_check
          %p2324 = pneg %p2323
        $region58: #{tpu_custom_call.1} parent=39 // pred_check_branch
          %2326 = sbr.rel (%p2324) target = $region60
        $region59: #{tpu_custom_call.1} parent=39 // pred_region
          %2327 = vst [vmem:[%s362] sm:$0xff] %v2088
          %2328 = vst [vmem:[%s362 + $0x8] sm:$0xff] %v2284
          %2329 = vst [vmem:[%s362 + $0x10] sm:$0xff] %v2090
          %2330 = vst [vmem:[%s362 + $0x18] sm:$0xff] %v2286
          %2331 = vst [vmem:[%s362 + $0x20] sm:$0xff] %v2093
          %2332 = vst [vmem:[%s362 + $0x28] sm:$0xff] %v2289
          %2333 = vst [vmem:[%s362 + $0x30] sm:$0xff] %v2095
          %2334 = vst [vmem:[%s362 + $0x38] sm:$0xff] %v2291
          %2335 = vst [vmem:[%s362 + $0x40] sm:$0xff] %v2098
          %2336 = vst [vmem:[%s362 + $0x48] sm:$0xff] %v2294
          %2337 = vst [vmem:[%s362 + $0x50] sm:$0xff] %v2100
          %2338 = vst [vmem:[%s362 + $0x58] sm:$0xff] %v2296
          %2339 = vst [vmem:[%s362 + $0x60] sm:$0xff] %v2103
          %2340 = vst [vmem:[%s362 + $0x68] sm:$0xff] %v2299
          %2341 = vst [vmem:[%s362 + $0x70] sm:$0xff] %v2105
          %2342 = vst [vmem:[%s362 + $0x78] sm:$0xff] %v2301
          %2343 = vst [vmem:[%s362 + $0x80] sm:$0xff] %v2108
          %2344 = vst [vmem:[%s362 + $0x88] sm:$0xff] %v2304
          %2345 = vst [vmem:[%s362 + $0x90] sm:$0xff] %v2110
          %2346 = vst [vmem:[%s362 + $0x98] sm:$0xff] %v2306
          %2347 = vst [vmem:[%s362 + $0xa0] sm:$0xff] %v2113
          %2348 = vst [vmem:[%s362 + $0xa8] sm:$0xff] %v2309
          %2349 = vst [vmem:[%s362 + $0xb0] sm:$0xff] %v2115
          %2350 = vst [vmem:[%s362 + $0xb8] sm:$0xff] %v2311
          %2351 = vst [vmem:[%s362 + $0xc0] sm:$0xff] %v2118
          %2352 = vst [vmem:[%s362 + $0xc8] sm:$0xff] %v2314
          %2353 = vst [vmem:[%s362 + $0xd0] sm:$0xff] %v2120
          %2354 = vst [vmem:[%s362 + $0xd8] sm:$0xff] %v2316
          %2355 = vst [vmem:[%s362 + $0xe0] sm:$0xff] %v2123
          %2356 = vst [vmem:[%s362 + $0xe8] sm:$0xff] %v2319
          %2357 = vst [vmem:[%s362 + $0xf0] sm:$0xff] %v2125
          %2358 = vst [vmem:[%s362 + $0xf8] sm:$0xff] %v2321
        $region60: #{tpu_custom_call.1} parent=39 // pred_fallthru
          _
        %p2359 = scmp.ne.s32.totalorder %s34, 0
        // Predicated region
        $region61: #{tpu_custom_call.1} parent=39 // pred_check
          %p2360 = pneg %p2359
        $region62: #{tpu_custom_call.1} parent=39 // pred_check_branch
          %2362 = sbr.rel (%p2360) target = $region64
        $region63: #{tpu_custom_call.1} parent=39 // pred_region
          %v2363 = vld [vmem:[%s362] sm:$0xff]
          %v2364 = vld [vmem:[%s362 + $0x8] sm:$0xff]
          %v2365 = vld [vmem:[%s362 + $0x10] sm:$0xff]
          %v2366 = vld [vmem:[%s362 + $0x18] sm:$0xff]
          %v2367 = vld [vmem:[%s362 + $0x20] sm:$0xff]
          %v2368 = vld [vmem:[%s362 + $0x28] sm:$0xff]
          %v2369 = vld [vmem:[%s362 + $0x30] sm:$0xff]
          %v2370 = vld [vmem:[%s362 + $0x38] sm:$0xff]
          %v2371 = vld [vmem:[%s362 + $0x40] sm:$0xff]
          %v2372 = vld [vmem:[%s362 + $0x48] sm:$0xff]
          %v2373 = vld [vmem:[%s362 + $0x50] sm:$0xff]
          %v2374 = vld [vmem:[%s362 + $0x58] sm:$0xff]
          %v2375 = vld [vmem:[%s362 + $0x60] sm:$0xff]
          %v2376 = vld [vmem:[%s362 + $0x68] sm:$0xff]
          %v2377 = vld [vmem:[%s362 + $0x70] sm:$0xff]
          %v2378 = vld [vmem:[%s362 + $0x78] sm:$0xff]
          %v2379 = vld [vmem:[%s362 + $0x80] sm:$0xff]
          %v2380 = vld [vmem:[%s362 + $0x88] sm:$0xff]
          %v2381 = vld [vmem:[%s362 + $0x90] sm:$0xff]
          %v2382 = vld [vmem:[%s362 + $0x98] sm:$0xff]
          %v2383 = vld [vmem:[%s362 + $0xa0] sm:$0xff]
          %v2384 = vld [vmem:[%s362 + $0xa8] sm:$0xff]
          %v2385 = vld [vmem:[%s362 + $0xb0] sm:$0xff]
          %v2386 = vld [vmem:[%s362 + $0xb8] sm:$0xff]
          %v2387 = vld [vmem:[%s362 + $0xc0] sm:$0xff]
          %v2388 = vld [vmem:[%s362 + $0xc8] sm:$0xff]
          %v2389 = vld [vmem:[%s362 + $0xd0] sm:$0xff]
          %v2390 = vld [vmem:[%s362 + $0xd8] sm:$0xff]
          %v2391 = vld [vmem:[%s362 + $0xe0] sm:$0xff]
          %v2392 = vld [vmem:[%s362 + $0xe8] sm:$0xff]
          %v2393 = vld [vmem:[%s362 + $0xf0] sm:$0xff]
          %v2394 = vld [vmem:[%s362 + $0xf8] sm:$0xff]
          %v2395 = vadd.f32 %v2363, %v2088
          %v2396 = vadd.f32 %v2364, %v2284
          %v2397 = vadd.f32 %v2365, %v2090
          %v2398 = vadd.f32 %v2366, %v2286
          %v2399 = vadd.f32 %v2367, %v2093
          %v2400 = vadd.f32 %v2368, %v2289
          %v2401 = vadd.f32 %v2369, %v2095
          %v2402 = vadd.f32 %v2370, %v2291
          %v2403 = vadd.f32 %v2371, %v2098
          %v2404 = vadd.f32 %v2372, %v2294
          %v2405 = vadd.f32 %v2373, %v2100
          %v2406 = vadd.f32 %v2374, %v2296
          %v2407 = vadd.f32 %v2375, %v2103
          %v2408 = vadd.f32 %v2376, %v2299
          %v2409 = vadd.f32 %v2377, %v2105
          %v2410 = vadd.f32 %v2378, %v2301
          %v2411 = vadd.f32 %v2379, %v2108
          %v2412 = vadd.f32 %v2380, %v2304
          %v2413 = vadd.f32 %v2381, %v2110
          %v2414 = vadd.f32 %v2382, %v2306
          %v2415 = vadd.f32 %v2383, %v2113
          %v2416 = vadd.f32 %v2384, %v2309
          %v2417 = vadd.f32 %v2385, %v2115
          %v2418 = vadd.f32 %v2386, %v2311
          %v2419 = vadd.f32 %v2387, %v2118
          %v2420 = vadd.f32 %v2388, %v2314
          %v2421 = vadd.f32 %v2389, %v2120
          %v2422 = vadd.f32 %v2390, %v2316
          %v2423 = vadd.f32 %v2391, %v2123
          %v2424 = vadd.f32 %v2392, %v2319
          %v2425 = vadd.f32 %v2393, %v2125
          %v2426 = vadd.f32 %v2394, %v2321
          %2427 = vst [vmem:[%s362] sm:$0xff] %v2395
          %2428 = vst [vmem:[%s362 + $0x8] sm:$0xff] %v2396
          %2429 = vst [vmem:[%s362 + $0x10] sm:$0xff] %v2397
          %2430 = vst [vmem:[%s362 + $0x18] sm:$0xff] %v2398
          %2431 = vst [vmem:[%s362 + $0x20] sm:$0xff] %v2399
          %2432 = vst [vmem:[%s362 + $0x28] sm:$0xff] %v2400
          %2433 = vst [vmem:[%s362 + $0x30] sm:$0xff] %v2401
          %2434 = vst [vmem:[%s362 + $0x38] sm:$0xff] %v2402
          %2435 = vst [vmem:[%s362 + $0x40] sm:$0xff] %v2403
          %2436 = vst [vmem:[%s362 + $0x48] sm:$0xff] %v2404
          %2437 = vst [vmem:[%s362 + $0x50] sm:$0xff] %v2405
          %2438 = vst [vmem:[%s362 + $0x58] sm:$0xff] %v2406
          %2439 = vst [vmem:[%s362 + $0x60] sm:$0xff] %v2407
          %2440 = vst [vmem:[%s362 + $0x68] sm:$0xff] %v2408
          %2441 = vst [vmem:[%s362 + $0x70] sm:$0xff] %v2409
          %2442 = vst [vmem:[%s362 + $0x78] sm:$0xff] %v2410
          %2443 = vst [vmem:[%s362 + $0x80] sm:$0xff] %v2411
          %2444 = vst [vmem:[%s362 + $0x88] sm:$0xff] %v2412
          %2445 = vst [vmem:[%s362 + $0x90] sm:$0xff] %v2413
          %2446 = vst [vmem:[%s362 + $0x98] sm:$0xff] %v2414
          %2447 = vst [vmem:[%s362 + $0xa0] sm:$0xff] %v2415
          %2448 = vst [vmem:[%s362 + $0xa8] sm:$0xff] %v2416
          %2449 = vst [vmem:[%s362 + $0xb0] sm:$0xff] %v2417
          %2450 = vst [vmem:[%s362 + $0xb8] sm:$0xff] %v2418
          %2451 = vst [vmem:[%s362 + $0xc0] sm:$0xff] %v2419
          %2452 = vst [vmem:[%s362 + $0xc8] sm:$0xff] %v2420
          %2453 = vst [vmem:[%s362 + $0xd0] sm:$0xff] %v2421
          %2454 = vst [vmem:[%s362 + $0xd8] sm:$0xff] %v2422
          %2455 = vst [vmem:[%s362 + $0xe0] sm:$0xff] %v2423
          %2456 = vst [vmem:[%s362 + $0xe8] sm:$0xff] %v2424
          %2457 = vst [vmem:[%s362 + $0xf0] sm:$0xff] %v2425
          %2458 = vst [vmem:[%s362 + $0xf8] sm:$0xff] %v2426
        $region64: #{tpu_custom_call.1} parent=39 // pred_fallthru
          _
        // Predicated region
        $region65: #{tpu_custom_call.1} parent=39 // pred_check
          %p2459 = pneg %p2323
        $region66: #{tpu_custom_call.1} parent=39 // pred_check_branch
          %2461 = sbr.rel (%p2459) target = $region68
        $region67: #{tpu_custom_call.1} parent=39 // pred_region
          %v2462 = vld [vmem:[%s362] sm:$0xff]
          %v2463 = vld [vmem:[%s362 + $0x8] sm:$0xff]
          %v2464 = vld [vmem:[%s362 + $0x10] sm:$0xff]
          %v2465 = vld [vmem:[%s362 + $0x18] sm:$0xff]
          %v2466 = vld [vmem:[%s362 + $0x20] sm:$0xff]
          %v2467 = vld [vmem:[%s362 + $0x28] sm:$0xff]
          %v2468 = vld [vmem:[%s362 + $0x30] sm:$0xff]
          %v2469 = vld [vmem:[%s362 + $0x38] sm:$0xff]
          %v2470 = vld [vmem:[%s362 + $0x40] sm:$0xff]
          %v2471 = vld [vmem:[%s362 + $0x48] sm:$0xff]
          %v2472 = vld [vmem:[%s362 + $0x50] sm:$0xff]
          %v2473 = vld [vmem:[%s362 + $0x58] sm:$0xff]
          %v2474 = vld [vmem:[%s362 + $0x60] sm:$0xff]
          %v2475 = vld [vmem:[%s362 + $0x68] sm:$0xff]
          %v2476 = vld [vmem:[%s362 + $0x70] sm:$0xff]
          %v2477 = vld [vmem:[%s362 + $0x78] sm:$0xff]
          %v2478 = vld [vmem:[%s362 + $0x80] sm:$0xff]
          %v2479 = vld [vmem:[%s362 + $0x88] sm:$0xff]
          %v2480 = vld [vmem:[%s362 + $0x90] sm:$0xff]
          %v2481 = vld [vmem:[%s362 + $0x98] sm:$0xff]
          %v2482 = vld [vmem:[%s362 + $0xa0] sm:$0xff]
          %v2483 = vld [vmem:[%s362 + $0xa8] sm:$0xff]
          %v2484 = vld [vmem:[%s362 + $0xb0] sm:$0xff]
          %v2485 = vld [vmem:[%s362 + $0xb8] sm:$0xff]
          %v2486 = vld [vmem:[%s362 + $0xc0] sm:$0xff]
          %v2487 = vld [vmem:[%s362 + $0xc8] sm:$0xff]
          %v2488 = vld [vmem:[%s362 + $0xd0] sm:$0xff]
          %v2489 = vld [vmem:[%s362 + $0xd8] sm:$0xff]
          %v2490 = vld [vmem:[%s362 + $0xe0] sm:$0xff]
          %v2491 = vld [vmem:[%s362 + $0xe8] sm:$0xff]
          %v2492 = vld [vmem:[%s362 + $0xf0] sm:$0xff]
          %v2493 = vld [vmem:[%s362 + $0xf8] sm:$0xff]
          %v2494 = vld [vmem:[%s4] sm:$0x3]
          %v2496 = vperm.slane %v2494, 0
          %v2497 = vperm.slane %v2494, 1
          %v2500 = vadd.f32 %v2462, %v2496
          %v2501 = vadd.f32 %v2463, %v2497
          %v2502 = vadd.f32 %v2464, %v2496
          %v2503 = vadd.f32 %v2465, %v2497
          %v2504 = vadd.f32 %v2466, %v2496
          %v2505 = vadd.f32 %v2467, %v2497
          %v2506 = vadd.f32 %v2468, %v2496
          %v2507 = vadd.f32 %v2469, %v2497
          %v2508 = vadd.f32 %v2470, %v2496
          %v2509 = vadd.f32 %v2471, %v2497
          %v2510 = vadd.f32 %v2472, %v2496
          %v2511 = vadd.f32 %v2473, %v2497
          %v2512 = vadd.f32 %v2474, %v2496
          %v2513 = vadd.f32 %v2475, %v2497
          %v2514 = vadd.f32 %v2476, %v2496
          %v2515 = vadd.f32 %v2477, %v2497
          %v2516 = vadd.f32 %v2478, %v2496
          %v2517 = vadd.f32 %v2479, %v2497
          %v2518 = vadd.f32 %v2480, %v2496
          %v2519 = vadd.f32 %v2481, %v2497
          %v2520 = vadd.f32 %v2482, %v2496
          %v2521 = vadd.f32 %v2483, %v2497
          %v2522 = vadd.f32 %v2484, %v2496
          %v2523 = vadd.f32 %v2485, %v2497
          %v2524 = vadd.f32 %v2486, %v2496
          %v2525 = vadd.f32 %v2487, %v2497
          %v2526 = vadd.f32 %v2488, %v2496
          %v2527 = vadd.f32 %v2489, %v2497
          %v2528 = vadd.f32 %v2490, %v2496
          %v2529 = vadd.f32 %v2491, %v2497
          %v2530 = vadd.f32 %v2492, %v2496
          %v2531 = vadd.f32 %v2493, %v2497
          %2532 = vst [vmem:[%s362] sm:$0xff] %v2500
          %2533 = vst [vmem:[%s362 + $0x8] sm:$0xff] %v2501
          %2534 = vst [vmem:[%s362 + $0x10] sm:$0xff] %v2502
          %2535 = vst [vmem:[%s362 + $0x18] sm:$0xff] %v2503
          %2536 = vst [vmem:[%s362 + $0x20] sm:$0xff] %v2504
          %2537 = vst [vmem:[%s362 + $0x28] sm:$0xff] %v2505
          %2538 = vst [vmem:[%s362 + $0x30] sm:$0xff] %v2506
          %2539 = vst [vmem:[%s362 + $0x38] sm:$0xff] %v2507
          %2540 = vst [vmem:[%s362 + $0x40] sm:$0xff] %v2508
          %2541 = vst [vmem:[%s362 + $0x48] sm:$0xff] %v2509
          %2542 = vst [vmem:[%s362 + $0x50] sm:$0xff] %v2510
          %2543 = vst [vmem:[%s362 + $0x58] sm:$0xff] %v2511
          %2544 = vst [vmem:[%s362 + $0x60] sm:$0xff] %v2512
          %2545 = vst [vmem:[%s362 + $0x68] sm:$0xff] %v2513
          %2546 = vst [vmem:[%s362 + $0x70] sm:$0xff] %v2514
          %2547 = vst [vmem:[%s362 + $0x78] sm:$0xff] %v2515
          %2548 = vst [vmem:[%s362 + $0x80] sm:$0xff] %v2516
          %2549 = vst [vmem:[%s362 + $0x88] sm:$0xff] %v2517
          %2550 = vst [vmem:[%s362 + $0x90] sm:$0xff] %v2518
          %2551 = vst [vmem:[%s362 + $0x98] sm:$0xff] %v2519
          %2552 = vst [vmem:[%s362 + $0xa0] sm:$0xff] %v2520
          %2553 = vst [vmem:[%s362 + $0xa8] sm:$0xff] %v2521
          %2554 = vst [vmem:[%s362 + $0xb0] sm:$0xff] %v2522
          %2555 = vst [vmem:[%s362 + $0xb8] sm:$0xff] %v2523
          %2556 = vst [vmem:[%s362 + $0xc0] sm:$0xff] %v2524
          %2557 = vst [vmem:[%s362 + $0xc8] sm:$0xff] %v2525
          %2558 = vst [vmem:[%s362 + $0xd0] sm:$0xff] %v2526
          %2559 = vst [vmem:[%s362 + $0xd8] sm:$0xff] %v2527
          %2560 = vst [vmem:[%s362 + $0xe0] sm:$0xff] %v2528
          %2561 = vst [vmem:[%s362 + $0xe8] sm:$0xff] %v2529
          %2562 = vst [vmem:[%s362 + $0xf0] sm:$0xff] %v2530
          %2563 = vst [vmem:[%s362 + $0xf8] sm:$0xff] %v2531
        $region68: #{tpu_custom_call.1} parent=39 // pred_fallthru
          _
        %s2564 = sand.u32 %s174, 1
        %s2565 = scalar_lea.sflag [#allocation4], %s2564
        %s2566 = sand.u32 %s174, 1
        %s2567 = smul.addr %s2566, 256
        %s2568 = scalar_lea.vmem [#allocation10], %s2567
        %s2569 = sand.u32 %s202, 1
        %s2570 = scalar_lea.sflag [#allocation12], %s2569
        %s2571 = sand.u32 %s202, 1
        %s2572 = smul.addr %s2571, 256
        %s2573 = scalar_lea.vmem [#allocation11], %s2572
        // Predicated region
        $region69: #{tpu_custom_call.1} parent=39 // pred_check
          %p2574 = pneg %p184
        $region70: #{tpu_custom_call.1} parent=39 // pred_check_branch
          %2576 = sbr.rel (%p2574) target = $region72
        $region71: #{tpu_custom_call.1} parent=39 // pred_region
          %s2577 = smul.u32 16, %s33
          %2579 = vsyncadd %s2565, 0
          %s2580 = smul.addr %s2577, 2
          %s2581 = smul.addr %s2580, 8
          %s2582 = scalar_lea.hbm %s5, %s2581
          %s2583 = sshll.u32 %s2568, 4
          %s2584 = int_to_ptr.vmem [resolvable:$true] %s2583
          %s2585 = sshll.u32 %s2582, 4
          %s2586 = int_to_ptr.hbm [resolvable:$true] %s2585
          %2591 = dma.vmem_to_hbm [thread:$0]  %s2584, 4096, %s2586, %s2565, 256, 256, 16
        $region72: #{tpu_custom_call.1} parent=39 // pred_fallthru
          _
        // Predicated region
        $region73: #{tpu_custom_call.1} parent=39 // pred_check
          %p2592 = pneg %p212
        $region74: #{tpu_custom_call.1} parent=39 // pred_check_branch
          %2594 = sbr.rel (%p2592) target = $region76
        $region75: #{tpu_custom_call.1} parent=39 // pred_region
          %s2595 = smul.u32 16, %s33
          %s2596 = smul.u32 4, %s34
          %2598 = vsyncadd %s2570, 0
          %s2599 = smul.addr %s2595, 4
          %s2600 = sadd.s32 %s2596, %s2599
          %s2601 = smul.addr %s2600, 4
          %s2602 = scalar_lea.hbm %s6, %s2601
          %s2603 = sshll.u32 %s2573, 4
          %s2604 = int_to_ptr.vmem [resolvable:$true] %s2603
          %s2605 = sshll.u32 %s2602, 4
          %s2606 = int_to_ptr.hbm [resolvable:$true] %s2605
          %2611 = dma.vmem_to_hbm [thread:$0]  %s2604, 4096, %s2606, %s2570, 256, 256, 16
        $region76: #{tpu_custom_call.1} parent=39 // pred_fallthru
          _
      $region40: #{tpu_custom_call.1} parent=5 // pred_fallthru
        _
      %p2612 = scmp.le.s32.totalorder 2, %s24
      // Predicated region
      $region77: #{tpu_custom_call.1} parent=5 // pred_check
        %p2613 = pneg %p2612
      $region78: #{tpu_custom_call.1} parent=5 // pred_check_branch
        %2615 = sbr.rel (%p2613) target = $region80
      $region79: #{tpu_custom_call.1} parent=5 // pred_region
        %s2616 = ssub.s32 %s24, 2
        // Predicated region
        $region81: #{tpu_custom_call.1} parent=79 // pred_check
          %p2617 = pneg %p190
        $region82: #{tpu_custom_call.1} parent=79 // pred_check_branch
          %2619 = sbr.rel (%p2617) target = $region84
        $region83: #{tpu_custom_call.1} parent=79 // pred_region
          %s2620 = sand.u32 %s175, 1
          %s2621 = scalar_lea.sflag [#allocation4], %s2620
          %s2622 = sand.u32 %s175, 1
          %s2623 = smul.addr %s2622, 256
          %s2624 = scalar_lea.vmem [#allocation10], %s2623
          %2626 = dma.done %s2621, 4096
        $region84: #{tpu_custom_call.1} parent=79 // pred_fallthru
          _
        // Predicated region
        $region85: #{tpu_custom_call.1} parent=79 // pred_check
          %p2627 = pneg %p218
        $region86: #{tpu_custom_call.1} parent=79 // pred_check_branch
          %2629 = sbr.rel (%p2627) target = $region88
        $region87: #{tpu_custom_call.1} parent=79 // pred_region
          %s2630 = sand.u32 %s203, 1
          %s2631 = scalar_lea.sflag [#allocation12], %s2630
          %s2632 = sand.u32 %s203, 1
          %s2633 = smul.addr %s2632, 256
          %s2634 = scalar_lea.vmem [#allocation11], %s2633
          %2636 = dma.done %s2631, 4096
        $region88: #{tpu_custom_call.1} parent=79 // pred_fallthru
          _
      $region80: #{tpu_custom_call.1} parent=5 // pred_fallthru
        _
    $region6: #{tpu_custom_call.1} parent=1 // loop_footer
      %s28 = sadd.s32 1, %s24
    $region7: #{tpu_custom_call.1} parent=1 // loop_footer_branch
      %23 = sbr.rel target = $region3
    $region8: #{tpu_custom_call.1} parent=1 // loop_exit
      _
    %2637 = vsyncpa [#allocation3], 1
    %s2638 = scalar_lea.sflag [#allocation3], 1
    %2639 = vsyncpa %s2638, 1
    %2640 = vsyncpa [#allocation6], 1
    %2641 = vsyncpa [#allocation9], 1
    %2642 = vsyncpa [#allocation4], 1
    %s2643 = scalar_lea.sflag [#allocation4], 1
    %2644 = vsyncpa %s2643, 1
    %2645 = vsyncpa [#allocation12], 1
    %s2646 = scalar_lea.sflag [#allocation12], 1
    %2647 = vsyncpa %s2646, 1

</llo_original>
